<compile_context>
chip_gen: v7x
topology: tpu7x:2x2x1
jax: 0.10.0
libtpu: 0.0.40
codegen_flags: <defaults>
</compile_context>

<pallas_src>
import functools
import math

import jax
import jax.numpy as jnp
import numpy as np
from jax import lax
from jax.experimental import pallas as pl
from jax.experimental.pallas import tpu as pltpu

LN_EPS = 1e-5  # torch nn.LayerNorm default


def _layer_norm(x, gamma, beta):
    # f32 statistics (keep even if activations/weights are bf16 elsewhere).
    mean = jnp.mean(x, axis=-1, keepdims=True)
    var = jnp.mean(jnp.square(x - mean), axis=-1, keepdims=True)
    return (x - mean) * lax.rsqrt(var + LN_EPS) * gamma + beta


# ----------------------------------------------------------------------------
# Fused kernel: grid = (batch_blocks, L).  Each step runs one full CLIPLayer
# (LN -> causal MHA -> residual -> LN -> MLP w/ quick-GELU -> residual) on a
# (Bb, S, D) activation block; the last step also applies the final LayerNorm.
# The output block is revisited across the layer axis and acts as the residual
# carry between layers (resident in VMEM, no HBM round-trip between layers).
# ----------------------------------------------------------------------------
def clip_stack_kernel(x_ref,
                      ln1_g_ref, ln1_b_ref,
                      wqkv_ref, bqkv_ref, wo_ref, bo_ref,
                      ln2_g_ref, ln2_b_ref,
                      w1_ref, b1_ref, w2_ref, b2_ref,
                      lnf_g_ref, lnf_b_ref,
                      o_ref, *, num_heads):
    l = pl.program_id(1)
    last = pl.num_programs(1) - 1
    bf16 = jnp.bfloat16

    # Layer 0 pulls the embedding activation in; afterwards o_ref (resident in
    # VMEM across the layer axis) carries the residual stream between layers.
    @pl.when(l == 0)
    def _():
        o_ref[...] = x_ref[...].astype(o_ref.dtype)

    x = o_ref[...].astype(jnp.float32)      # (Bb, S, D) residual stream, f32
    Bb, S, D = x.shape
    dh = D // num_heads
    scale = jnp.float32(1.0 / math.sqrt(dh))
    neg_inf = jnp.float32(-jnp.inf)

    # ---------------- attention block ----------------
    h = _layer_norm(x, ln1_g_ref[0], ln1_b_ref[0])
    h2 = h.reshape(Bb * S, D).astype(bf16)            # bf16 into the MXU, M = Bb*S
    qkv = jnp.dot(h2, wqkv_ref[0], preferred_element_type=jnp.float32) + bqkv_ref[0]
    qkv = qkv.reshape(Bb, S, 3 * D)
    # Fold 1/sqrt(dh) into q once (mask uses -inf, unaffected by a positive scale,
    # so mask-then-scale in the torch code is equivalent).
    q = qkv[:, :, 0 * D:1 * D] * scale
    k = qkv[:, :, 1 * D:2 * D]
    v = qkv[:, :, 2 * D:3 * D]

    row = lax.broadcasted_iota(jnp.int32, (S, S), 0)
    col = lax.broadcasted_iota(jnp.int32, (S, S), 1)
    causal = col > row                       # causal_mask=True (masked_fill -inf)

    # Per-head out-projection accumulation: acc += o_h @ wo[h-rows, :].  No attn
    # scratch, no lane-misaligned masked stores; wo is sliced along the sublane
    # (contraction) axis which is layout-cheap.
    wo = wo_ref[0]                           # (D, D) bf16, loaded once per layer
    acc = jnp.zeros((Bb * S, D), jnp.float32)
    for hd in range(num_heads):              # static unroll over heads, batched over Bb
        sl = slice(hd * dh, (hd + 1) * dh)
        qh = q[:, :, sl].astype(bf16)
        kh = k[:, :, sl].astype(bf16)
        vh = v[:, :, sl].astype(bf16)
        s = jnp.einsum("bqd,bkd->bqk", qh, kh, preferred_element_type=jnp.float32)
        s = jnp.where(causal, neg_inf, s)
        s = s - jnp.max(s, axis=-1, keepdims=True)
        p = jnp.exp(s)
        p = p / jnp.sum(p, axis=-1, keepdims=True)          # exact softmax denom
        oh = jnp.einsum("bqk,bkd->bqd", p.astype(bf16), vh,
                        preferred_element_type=jnp.float32)
        acc = acc + jnp.dot(oh.reshape(Bb * S, dh).astype(bf16), wo[sl, :],
                            preferred_element_type=jnp.float32)

    x = x + (acc + bo_ref[0]).reshape(Bb, S, D)

    # ---------------- MLP block ----------------
    h = _layer_norm(x, ln2_g_ref[0], ln2_b_ref[0])
    h = h.reshape(Bb * S, D).astype(bf16)
    h = jnp.dot(h, w1_ref[0], preferred_element_type=jnp.float32) + b1_ref[0]
    h = h * jax.nn.sigmoid(1.702 * h)        # quick-GELU in f32
    h = jnp.dot(h.astype(bf16), w2_ref[0],
                preferred_element_type=jnp.float32) + b2_ref[0]
    x = x + h.reshape(Bb, S, D)

    # Carry residual stream to the next layer step (skip on last step: the final
    # LayerNorm branch below is the only writer there — no redundant full store).
    @pl.when(l < last)
    def _():
        o_ref[...] = x.astype(o_ref.dtype)

    # Final LayerNorm fused into the last layer step (no extra kernel / HBM trip).
    @pl.when(l == last)
    def _():
        o_ref[...] = _layer_norm(x, lnf_g_ref[...], lnf_b_ref[...]).astype(o_ref.dtype)


# ----------------------------------------------------------------------------
# Wrapper calling pallas_call
# ----------------------------------------------------------------------------
def run_clip_layers(x, p, num_heads, *, batch_block=None):
    B, S, D = x.shape
    assert D % num_heads == 0
    # Keep Bb = B unless forced: the kernel is weight-HBM-bound at CLIP-text batch
    # sizes, and splitting the batch re-streams the full per-layer weight set.
    Bb = B if batch_block is None else batch_block
    assert B % Bb == 0
    L = p["wqkv"].shape[0]

    def per_layer(*shape):
        # Per-layer stacked parameter: leading L axis indexed by the layer grid axis
        # (default double buffering -> layer l+1 weights prefetch while l computes).
        return pl.BlockSpec((1,) + shape, lambda ib, l: (l,) + (0,) * len(shape))

    def replicated(*shape):
        return pl.BlockSpec(shape, lambda ib, l: (0,) * len(shape))

    x_spec = pl.BlockSpec((Bb, S, D), lambda ib, l: (ib, 0, 0))

    in_specs = [
        x_spec,                                         # embedded activations
        per_layer(1, D), per_layer(1, D),               # ln1 gamma/beta
        per_layer(D, 3 * D), per_layer(1, 3 * D),       # qkv in_proj (pre-transposed) + bias
        per_layer(D, D), per_layer(1, D),               # out_proj
        per_layer(1, D), per_layer(1, D),               # ln2 gamma/beta
        per_layer(D, 4 * D), per_layer(1, 4 * D),       # linear_1
        per_layer(4 * D, D), per_layer(1, D),           # linear_2
        replicated(1, D), replicated(1, D),             # final LayerNorm gamma/beta
    ]

    return pl.pallas_call(
        functools.partial(clip_stack_kernel, num_heads=num_heads),
        out_shape=jax.ShapeDtypeStruct((B, S, D), jnp.float32),
        grid=(B // Bb, L),
        in_specs=in_specs,
        out_specs=x_spec,                               # same block across l -> resident carry
        compiler_params=pltpu.CompilerParams(
            dimension_semantics=("parallel", "arbitrary"),
            # Re-derived for v7x's 64 MiB/TC: double-buffered bf16 weights (~28.5 MiB
            # at D=768) + resident carry + intermediates; leaves headroom for Mosaic
            # internal scratch.
            vmem_limit_bytes=40 * 1024 * 1024),
    )(x,
      p["ln1_g"], p["ln1_b"], p["wqkv"], p["bqkv"], p["wo"], p["bo"],
      p["ln2_g"], p["ln2_b"], p["w1"], p["b1"], p["w2"], p["b2"],
      p["lnf_g"], p["lnf_b"])


def clip_forward(tokens, params, num_heads):
    # CLIPEmbedding: token gather + learned position embedding.
    # TODO(synk): the data-dependent embedding row gather stays in plain JAX glue.
    x = params["token_emb"][tokens] + params["pos_emb"]       # (B, S, D) f32
    return run_clip_layers(x, params, num_heads)


# ----------------------------------------------------------------------------
# Deterministic synthetic parameters (shapes follow the torch module __init__,
# stacked per layer with a leading L axis; big matrices in bf16).
# ----------------------------------------------------------------------------
def init_clip_params(key, vocab, seq, d, layers):
    ks = jax.random.split(key, 16)
    f32, bf16 = jnp.float32, jnp.bfloat16

    def nrm(k, shape, dtype=f32, scl=0.02):
        return (scl * jax.random.normal(k, shape, f32)).astype(dtype)

    return {
        # CLIPEmbedding
        "token_emb": nrm(ks[0], (vocab, d)),
        "pos_emb": jnp.zeros((seq, d), f32),      # nn.Parameter(torch.zeros(...))
        # per-layer stacks; linear weights pre-transposed to (in, out)
        "ln1_g": 1.0 + nrm(ks[1], (layers, 1, d), scl=0.1),
        "ln1_b": nrm(ks[2], (layers, 1, d), scl=0.1),
        "wqkv": nrm(ks[3], (layers, d, 3 * d), bf16),
        "bqkv": nrm(ks[4], (layers, 1, 3 * d)),
        "wo":   nrm(ks[5], (layers, d, d), bf16),
        "bo":   nrm(ks[6], (layers, 1, d)),
        "ln2_g": 1.0 + nrm(ks[7], (layers, 1, d), scl=0.1),
        "ln2_b": nrm(ks[8], (layers, 1, d), scl=0.1),
        "w1":   nrm(ks[9], (layers, d, 4 * d), bf16),
        "b1":   nrm(ks[10], (layers, 1, 4 * d)),
        "w2":   nrm(ks[11], (layers, 4 * d, d), bf16),
        "b2":   nrm(ks[12], (layers, 1, d)),
        # final LayerNorm
        "lnf_g": 1.0 + nrm(ks[13], (1, d), scl=0.1),
        "lnf_b": nrm(ks[14], (1, d), scl=0.1),
    }


# ----------------------------------------------------------------------------
# Pure-JAX reference (mirrors the torch forward; applies the same bf16 operand
# roundings the kernel feeds the MXU so the comparison is tight).
# ----------------------------------------------------------------------------
def ref_forward(tokens, params, num_heads):
    hp = lax.Precision.HIGHEST
    f32, bf16 = jnp.float32, jnp.bfloat16

    def r(a):                                   # bf16 operand rounding, exact products in f32
        return a.astype(bf16).astype(f32)

    def mm(a, w):
        return jnp.dot(r(a), w.astype(f32), precision=hp)

    def ln(x, g, b):
        m = x.mean(-1, keepdims=True)
        v = ((x - m) ** 2).mean(-1, keepdims=True)
        return (x - m) * lax.rsqrt(v + LN_EPS) * g + b

    x = params["token_emb"][tokens] + params["pos_emb"]
    B, S, D = x.shape
    dh = D // num_heads
    L = params["wqkv"].shape[0]
    causal = jnp.triu(jnp.ones((S, S), bool), 1)
    scale = jnp.float32(1.0 / math.sqrt(dh))

    for l in range(L):
        res = x
        h = ln(x, params["ln1_g"][l], params["ln1_b"][l])
        qkv = mm(h.reshape(B * S, D), params["wqkv"][l]) + params["bqkv"][l]
        qkv = qkv.reshape(B, S, 3 * D)
        q = qkv[:, :, 0 * D:1 * D] * scale
        k = qkv[:, :, 1 * D:2 * D]
        v = qkv[:, :, 2 * D:3 * D]
        attn = jnp.zeros((B * S, D), f32)
        for hd in range(num_heads):
            sl = slice(hd * dh, (hd + 1) * dh)
            s = jnp.einsum("bqd,bkd->bqk", r(q[:, :, sl]), r(k[:, :, sl]), precision=hp)
            s = jnp.where(causal, -jnp.inf, s)
            s = s - s.max(-1, keepdims=True)
            p = jnp.exp(s)
            p = p / p.sum(-1, keepdims=True)
            oh = jnp.einsum("bqk,bkd->bqd", r(p), r(v[:, :, sl]), precision=hp)
            attn = attn + jnp.dot(r(oh.reshape(B * S, dh)),
                                  params["wo"][l][sl, :].astype(f32), precision=hp)
        x = res + (attn + params["bo"][l]).reshape(B, S, D)

        res = x
        h = ln(x, params["ln2_g"][l], params["ln2_b"][l])
        h = mm(h.reshape(B * S, D), params["w1"][l]) + params["b1"][l]
        h = h * jax.nn.sigmoid(1.702 * h)
        x = res + (mm(h, params["w2"][l]) + params["b2"][l]).reshape(B, S, D)
    return ln(x, params["lnf_g"], params["lnf_b"])


if __name__ == "__main__":
    # Small but structurally faithful configuration.
    B, S, D, H, L, V = 2, 8, 64, 4, 2, 128

    key = jax.random.PRNGKey(0)
    kp, kt = jax.random.split(key)
    params = init_clip_params(kp, V, S, D, L)
    tokens = jax.random.randint(kt, (B, S), 0, V, dtype=jnp.int32)  # LongTensor analogue

    out = jax.block_until_ready(clip_forward(tokens, params, H))
    ref = jax.block_until_ready(ref_forward(tokens, params, H))

    assert out.shape == (B, S, D) and out.dtype == jnp.float32
    np.testing.assert_allclose(np.asarray(out), np.asarray(ref), atol=5e-3, rtol=5e-3)
    print("KERNEL_OK")
</pallas_src>

<mosaic_0001>
module attributes {stable_mosaic.version = 11 : i64} {
  func.func @clip_stack_kernel(%arg0: i32, %arg1: i32, %arg2: memref<2x8x64xf32, #tpu.memory_space<vmem>>, %arg3: memref<1x1x64xf32, #tpu.memory_space<vmem>>, %arg4: memref<1x1x64xf32, #tpu.memory_space<vmem>>, %arg5: memref<1x64x192xbf16, #tpu.memory_space<vmem>>, %arg6: memref<1x1x192xf32, #tpu.memory_space<vmem>>, %arg7: memref<1x64x64xbf16, #tpu.memory_space<vmem>>, %arg8: memref<1x1x64xf32, #tpu.memory_space<vmem>>, %arg9: memref<1x1x64xf32, #tpu.memory_space<vmem>>, %arg10: memref<1x1x64xf32, #tpu.memory_space<vmem>>, %arg11: memref<1x64x256xbf16, #tpu.memory_space<vmem>>, %arg12: memref<1x1x256xf32, #tpu.memory_space<vmem>>, %arg13: memref<1x256x64xbf16, #tpu.memory_space<vmem>>, %arg14: memref<1x1x64xf32, #tpu.memory_space<vmem>>, %arg15: memref<1x64xf32, #tpu.memory_space<vmem>>, %arg16: memref<1x64xf32, #tpu.memory_space<vmem>>, %arg17: memref<2x8x64xf32, #tpu.memory_space<vmem>>) attributes {dimension_semantics = [#tpu.dimension_semantics<parallel>, #tpu.dimension_semantics<arbitrary>], iteration_bounds = array<i64: 1, 2>, scalar_prefetch = 0 : i64, scratch_operands = 0 : i64, tpu.core_type = #tpu.core_type<tc>, window_params = [{transform_indices = @transform_0, window_bounds = array<i64: 2, 8, 64>}, {transform_indices = @transform_1, window_bounds = array<i64: 1, 1, 64>}, {transform_indices = @transform_2, window_bounds = array<i64: 1, 1, 64>}, {transform_indices = @transform_3, window_bounds = array<i64: 1, 64, 192>}, {transform_indices = @transform_4, window_bounds = array<i64: 1, 1, 192>}, {transform_indices = @transform_5, window_bounds = array<i64: 1, 64, 64>}, {transform_indices = @transform_6, window_bounds = array<i64: 1, 1, 64>}, {transform_indices = @transform_7, window_bounds = array<i64: 1, 1, 64>}, {transform_indices = @transform_8, window_bounds = array<i64: 1, 1, 64>}, {transform_indices = @transform_9, window_bounds = array<i64: 1, 64, 256>}, {transform_indices = @transform_10, window_bounds = array<i64: 1, 1, 256>}, {transform_indices = @transform_11, window_bounds = array<i64: 1, 256, 64>}, {transform_indices = @transform_12, window_bounds = array<i64: 1, 1, 64>}, {pipeline_mode = #tpu.pipeline_mode<synchronous>, transform_indices = @transform_13, window_bounds = array<i64: 1, 64>}, {pipeline_mode = #tpu.pipeline_mode<synchronous>, transform_indices = @transform_14, window_bounds = array<i64: 1, 64>}, {transform_indices = @transform_15, window_bounds = array<i64: 2, 8, 64>}]} {
    %c0_i32 = arith.constant 0 : i32
    %0 = arith.cmpi eq, %arg1, %c0_i32 : i32
    %1 = arith.extui %0 : i1 to i32
    %c0_i32_0 = arith.constant 0 : i32
    %2 = arith.cmpi ne, %1, %c0_i32_0 : i32
    scf.if %2 {
      %c0_82 = arith.constant 0 : index
      %c0_83 = arith.constant 0 : index
      %c0_84 = arith.constant 0 : index
      %228 = vector.load %arg2[%c0_82, %c0_83, %c0_84] : memref<2x8x64xf32, #tpu.memory_space<vmem>>, vector<2x8x64xf32>
      %c0_85 = arith.constant 0 : index
      %c0_86 = arith.constant 0 : index
      %c0_87 = arith.constant 0 : index
      %229 = vector.load %arg17[%c0_85, %c0_86, %c0_87] : memref<2x8x64xf32, #tpu.memory_space<vmem>>, vector<2x8x64xf32>
      tpu.vector_store %arg17[%c0_85, %c0_86, %c0_87], %228 {strides = array<i32>} : memref<2x8x64xf32, #tpu.memory_space<vmem>>, vector<2x8x64xf32>,
    } else {
    }
    %c0 = arith.constant 0 : index
    %c0_1 = arith.constant 0 : index
    %c0_2 = arith.constant 0 : index
    %3 = vector.load %arg17[%c0, %c0_1, %c0_2] : memref<2x8x64xf32, #tpu.memory_space<vmem>>, vector<2x8x64xf32>
    %c0_3 = arith.constant 0 : index
    %c0_4 = arith.constant 0 : index
    %c0_5 = arith.constant 0 : index
    %4 = vector.load %arg3[%c0_3, %c0_4, %c0_5] : memref<1x1x64xf32, #tpu.memory_space<vmem>>, vector<1x1x64xf32>
    %5 = vector.shape_cast %4 : vector<1x1x64xf32> to vector<1x64xf32>
    %c0_6 = arith.constant 0 : index
    %c0_7 = arith.constant 0 : index
    %c0_8 = arith.constant 0 : index
    %6 = vector.load %arg4[%c0_6, %c0_7, %c0_8] : memref<1x1x64xf32, #tpu.memory_space<vmem>>, vector<1x1x64xf32>
    %7 = vector.shape_cast %6 : vector<1x1x64xf32> to vector<1x64xf32>
    %cst = arith.constant dense<0.000000e+00> : vector<2x8xf32>
    %8 = vector.multi_reduction <add>, %3, %cst [2] : vector<2x8x64xf32> to vector<2x8xf32>
    %9 = vector.shape_cast %8 : vector<2x8xf32> to vector<2x8x1xf32>
    %cst_9 = arith.constant 6.400000e+01 : f32
    %10 = vector.broadcast %cst_9 : f32 to vector<2x8x1xf32>
    %11 = arith.divf %9, %10 : vector<2x8x1xf32>
    %12 = vector.broadcast %11 : vector<2x8x1xf32> to vector<2x8x64xf32>
    %13 = arith.subf %3, %12 : vector<2x8x64xf32>
    %14 = arith.mulf %13, %13 : vector<2x8x64xf32>
    %cst_10 = arith.constant dense<0.000000e+00> : vector<2x8xf32>
    %15 = vector.multi_reduction <add>, %14, %cst_10 [2] : vector<2x8x64xf32> to vector<2x8xf32>
    %16 = vector.shape_cast %15 : vector<2x8xf32> to vector<2x8x1xf32>
    %cst_11 = arith.constant 6.400000e+01 : f32
    %17 = vector.broadcast %cst_11 : f32 to vector<2x8x1xf32>
    %18 = arith.divf %16, %17 : vector<2x8x1xf32>
    %19 = vector.broadcast %11 : vector<2x8x1xf32> to vector<2x8x64xf32>
    %20 = arith.subf %3, %19 : vector<2x8x64xf32>
    %cst_12 = arith.constant 9.99999974E-6 : f32
    %21 = vector.broadcast %cst_12 : f32 to vector<2x8x1xf32>
    %22 = arith.addf %18, %21 : vector<2x8x1xf32>
    %23 = math.rsqrt %22 : vector<2x8x1xf32>
    %24 = vector.broadcast %23 : vector<2x8x1xf32> to vector<2x8x64xf32>
    %25 = arith.mulf %20, %24 : vector<2x8x64xf32>
    %26 = vector.shape_cast %5 : vector<1x64xf32> to vector<1x1x64xf32>
    %27 = vector.broadcast %26 : vector<1x1x64xf32> to vector<2x8x64xf32>
    %28 = arith.mulf %25, %27 : vector<2x8x64xf32>
    %29 = vector.shape_cast %7 : vector<1x64xf32> to vector<1x1x64xf32>
    %30 = vector.broadcast %29 : vector<1x1x64xf32> to vector<2x8x64xf32>
    %31 = arith.addf %28, %30 : vector<2x8x64xf32>
    %32 = vector.shape_cast %31 : vector<2x8x64xf32> to vector<16x64xf32>
    %33 = arith.truncf %32 : vector<16x64xf32> to vector<16x64xbf16>
    %c0_13 = arith.constant 0 : index
    %c0_14 = arith.constant 0 : index
    %c0_15 = arith.constant 0 : index
    %34 = vector.load %arg5[%c0_13, %c0_14, %c0_15] : memref<1x64x192xbf16, #tpu.memory_space<vmem>>, vector<1x64x192xbf16>
    %35 = vector.shape_cast %34 : vector<1x64x192xbf16> to vector<64x192xbf16>
    %cst_16 = arith.constant dense<0.000000e+00> : vector<16x192xf32>
    %36 = tpu.matmul %33, %35, %cst_16 {dimension_numbers = #tpu.dot_dimension_numbers<[1], [0], [0], [1], [0, 0, 1, 1], [], []>} : vector<16x64xbf16>, vector<64x192xbf16>, vector<16x192xf32> -> vector<16x192xf32>
    %c0_17 = arith.constant 0 : index
    %c0_18 = arith.constant 0 : index
    %c0_19 = arith.constant 0 : index
    %37 = vector.load %arg6[%c0_17, %c0_18, %c0_19] : memref<1x1x192xf32, #tpu.memory_space<vmem>>, vector<1x1x192xf32>
    %38 = vector.shape_cast %37 : vector<1x1x192xf32> to vector<1x192xf32>
    %39 = vector.broadcast %38 : vector<1x192xf32> to vector<16x192xf32>
    %40 = arith.addf %36, %39 : vector<16x192xf32>
    %41 = vector.shape_cast %40 : vector<16x192xf32> to vector<2x8x192xf32>
    %42 = vector.extract_strided_slice %41 {offsets = [0, 0, 0], sizes = [2, 8, 64], strides = [1, 1, 1]} : vector<2x8x192xf32> to vector<2x8x64xf32>
    %cst_20 = arith.constant 2.500000e-01 : f32
    %43 = vector.broadcast %cst_20 : f32 to vector<2x8x64xf32>
    %44 = arith.mulf %42, %43 : vector<2x8x64xf32>
    %45 = vector.extract_strided_slice %41 {offsets = [0, 0, 64], sizes = [2, 8, 64], strides = [1, 1, 1]} : vector<2x8x192xf32> to vector<2x8x64xf32>
    %46 = vector.extract_strided_slice %41 {offsets = [0, 0, 128], sizes = [2, 8, 64], strides = [1, 1, 1]} : vector<2x8x192xf32> to vector<2x8x64xf32>
    %47 = tpu.iota {dimensions = array<i32: 0>} : vector<8x8xi32>
    %48 = tpu.iota {dimensions = array<i32: 1>} : vector<8x8xi32>
    %49 = arith.cmpi sgt, %48, %47 : vector<8x8xi32>
    %c0_21 = arith.constant 0 : index
    %c0_22 = arith.constant 0 : index
    %c0_23 = arith.constant 0 : index
    %50 = vector.load %arg7[%c0_21, %c0_22, %c0_23] : memref<1x64x64xbf16, #tpu.memory_space<vmem>>, vector<1x64x64xbf16>
    %51 = vector.shape_cast %50 : vector<1x64x64xbf16> to vector<64x64xbf16>
    %cst_24 = arith.constant 0.000000e+00 : f32
    %52 = vector.broadcast %cst_24 : f32 to vector<16x64xf32>
    %53 = vector.extract_strided_slice %44 {offsets = [0, 0, 0], sizes = [2, 8, 16], strides = [1, 1, 1]} : vector<2x8x64xf32> to vector<2x8x16xf32>
    %54 = arith.truncf %53 : vector<2x8x16xf32> to vector<2x8x16xbf16>
    %55 = vector.extract_strided_slice %45 {offsets = [0, 0, 0], sizes = [2, 8, 16], strides = [1, 1, 1]} : vector<2x8x64xf32> to vector<2x8x16xf32>
    %56 = arith.truncf %55 : vector<2x8x16xf32> to vector<2x8x16xbf16>
    %57 = vector.extract_strided_slice %46 {offsets = [0, 0, 0], sizes = [2, 8, 16], strides = [1, 1, 1]} : vector<2x8x64xf32> to vector<2x8x16xf32>
    %58 = arith.truncf %57 : vector<2x8x16xf32> to vector<2x8x16xbf16>
    "tpu.trace_start"() <{level = 10 : i32, message = "bqd,bkd->bqk"}> : () -> ()
    %cst_25 = arith.constant dense<0.000000e+00> : vector<2x8x8xf32>
    %59 = tpu.matmul %54, %56, %cst_25 {dimension_numbers = #tpu.dot_dimension_numbers<[2], [2], [1], [1], [0, 0, 0, 1, 1, 1], [0], [0]>} : vector<2x8x16xbf16>, vector<2x8x16xbf16>, vector<2x8x8xf32> -> vector<2x8x8xf32>
    %cst_26 = arith.constant 0xFF800000 : f32
    "tpu.trace_stop"() : () -> ()
    %60 = vector.shape_cast %49 : vector<8x8xi1> to vector<1x8x8xi1>
    %61 = vector.broadcast %60 : vector<1x8x8xi1> to vector<2x8x8xi1>
    %62 = vector.broadcast %cst_26 : f32 to vector<2x8x8xf32>
    %63 = arith.select %61, %62, %59 : vector<2x8x8xi1>, vector<2x8x8xf32>
    %cst_27 = arith.constant dense<0xFF800000> : vector<2x8xf32>
    %64 = vector.multi_reduction <maximumf>, %63, %cst_27 [2] : vector<2x8x8xf32> to vector<2x8xf32>
    %65 = vector.shape_cast %64 : vector<2x8xf32> to vector<2x8x1xf32>
    %66 = vector.broadcast %65 : vector<2x8x1xf32> to vector<2x8x8xf32>
    %67 = arith.subf %63, %66 : vector<2x8x8xf32>
    %68 = math.exp %67 : vector<2x8x8xf32>
    %cst_28 = arith.constant dense<0.000000e+00> : vector<2x8xf32>
    %69 = vector.multi_reduction <add>, %68, %cst_28 [2] : vector<2x8x8xf32> to vector<2x8xf32>
    %70 = vector.shape_cast %69 : vector<2x8xf32> to vector<2x8x1xf32>
    %71 = vector.broadcast %70 : vector<2x8x1xf32> to vector<2x8x8xf32>
    %72 = arith.divf %68, %71 : vector<2x8x8xf32>
    %73 = arith.truncf %72 : vector<2x8x8xf32> to vector<2x8x8xbf16>
    "tpu.trace_start"() <{level = 10 : i32, message = "bqk,bkd->bqd"}> : () -> ()
    %cst_29 = arith.constant dense<0.000000e+00> : vector<2x8x16xf32>
    %74 = tpu.matmul %73, %58, %cst_29 {dimension_numbers = #tpu.dot_dimension_numbers<[2], [1], [1], [2], [0, 0, 0, 1, 1, 2], [0], [0]>} : vector<2x8x8xbf16>, vector<2x8x16xbf16>, vector<2x8x16xf32> -> vector<2x8x16xf32>
    "tpu.trace_stop"() : () -> ()
    %75 = vector.shape_cast %74 : vector<2x8x16xf32> to vector<16x16xf32>
    %76 = arith.truncf %75 : vector<16x16xf32> to vector<16x16xbf16>
    %77 = vector.extract_strided_slice %51 {offsets = [0, 0], sizes = [16, 64], strides = [1, 1]} : vector<64x64xbf16> to vector<16x64xbf16>
    %cst_30 = arith.constant dense<0.000000e+00> : vector<16x64xf32>
    %78 = tpu.matmul %76, %77, %cst_30 {dimension_numbers = #tpu.dot_dimension_numbers<[1], [0], [0], [1], [0, 0, 1, 1], [], []>} : vector<16x16xbf16>, vector<16x64xbf16>, vector<16x64xf32> -> vector<16x64xf32>
    %79 = arith.addf %52, %78 : vector<16x64xf32>
    %80 = vector.extract_strided_slice %44 {offsets = [0, 0, 16], sizes = [2, 8, 16], strides = [1, 1, 1]} : vector<2x8x64xf32> to vector<2x8x16xf32>
    %81 = arith.truncf %80 : vector<2x8x16xf32> to vector<2x8x16xbf16>
    %82 = vector.extract_strided_slice %45 {offsets = [0, 0, 16], sizes = [2, 8, 16], strides = [1, 1, 1]} : vector<2x8x64xf32> to vector<2x8x16xf32>
    %83 = arith.truncf %82 : vector<2x8x16xf32> to vector<2x8x16xbf16>
    %84 = vector.extract_strided_slice %46 {offsets = [0, 0, 16], sizes = [2, 8, 16], strides = [1, 1, 1]} : vector<2x8x64xf32> to vector<2x8x16xf32>
    %85 = arith.truncf %84 : vector<2x8x16xf32> to vector<2x8x16xbf16>
    "tpu.trace_start"() <{level = 10 : i32, message = "bqd,bkd->bqk"}> : () -> ()
    %cst_31 = arith.constant dense<0.000000e+00> : vector<2x8x8xf32>
    %86 = tpu.matmul %81, %83, %cst_31 {dimension_numbers = #tpu.dot_dimension_numbers<[2], [2], [1], [1], [0, 0, 0, 1, 1, 1], [0], [0]>} : vector<2x8x16xbf16>, vector<2x8x16xbf16>, vector<2x8x8xf32> -> vector<2x8x8xf32>
    %cst_32 = arith.constant 0xFF800000 : f32
    "tpu.trace_stop"() : () -> ()
    %87 = vector.shape_cast %49 : vector<8x8xi1> to vector<1x8x8xi1>
    %88 = vector.broadcast %87 : vector<1x8x8xi1> to vector<2x8x8xi1>
    %89 = vector.broadcast %cst_32 : f32 to vector<2x8x8xf32>
    %90 = arith.select %88, %89, %86 : vector<2x8x8xi1>, vector<2x8x8xf32>
    %cst_33 = arith.constant dense<0xFF800000> : vector<2x8xf32>
    %91 = vector.multi_reduction <maximumf>, %90, %cst_33 [2] : vector<2x8x8xf32> to vector<2x8xf32>
    %92 = vector.shape_cast %91 : vector<2x8xf32> to vector<2x8x1xf32>
    %93 = vector.broadcast %92 : vector<2x8x1xf32> to vector<2x8x8xf32>
    %94 = arith.subf %90, %93 : vector<2x8x8xf32>
    %95 = math.exp %94 : vector<2x8x8xf32>
    %cst_34 = arith.constant dense<0.000000e+00> : vector<2x8xf32>
    %96 = vector.multi_reduction <add>, %95, %cst_34 [2] : vector<2x8x8xf32> to vector<2x8xf32>
    %97 = vector.shape_cast %96 : vector<2x8xf32> to vector<2x8x1xf32>
    %98 = vector.broadcast %97 : vector<2x8x1xf32> to vector<2x8x8xf32>
    %99 = arith.divf %95, %98 : vector<2x8x8xf32>
    %100 = arith.truncf %99 : vector<2x8x8xf32> to vector<2x8x8xbf16>
    "tpu.trace_start"() <{level = 10 : i32, message = "bqk,bkd->bqd"}> : () -> ()
    %cst_35 = arith.constant dense<0.000000e+00> : vector<2x8x16xf32>
    %101 = tpu.matmul %100, %85, %cst_35 {dimension_numbers = #tpu.dot_dimension_numbers<[2], [1], [1], [2], [0, 0, 0, 1, 1, 2], [0], [0]>} : vector<2x8x8xbf16>, vector<2x8x16xbf16>, vector<2x8x16xf32> -> vector<2x8x16xf32>
    "tpu.trace_stop"() : () -> ()
    %102 = vector.shape_cast %101 : vector<2x8x16xf32> to vector<16x16xf32>
    %103 = arith.truncf %102 : vector<16x16xf32> to vector<16x16xbf16>
    %104 = vector.extract_strided_slice %51 {offsets = [16, 0], sizes = [16, 64], strides = [1, 1]} : vector<64x64xbf16> to vector<16x64xbf16>
    %cst_36 = arith.constant dense<0.000000e+00> : vector<16x64xf32>
    %105 = tpu.matmul %103, %104, %cst_36 {dimension_numbers = #tpu.dot_dimension_numbers<[1], [0], [0], [1], [0, 0, 1, 1], [], []>} : vector<16x16xbf16>, vector<16x64xbf16>, vector<16x64xf32> -> vector<16x64xf32>
    %106 = arith.addf %79, %105 : vector<16x64xf32>
    %107 = vector.extract_strided_slice %44 {offsets = [0, 0, 32], sizes = [2, 8, 16], strides = [1, 1, 1]} : vector<2x8x64xf32> to vector<2x8x16xf32>
    %108 = arith.truncf %107 : vector<2x8x16xf32> to vector<2x8x16xbf16>
    %109 = vector.extract_strided_slice %45 {offsets = [0, 0, 32], sizes = [2, 8, 16], strides = [1, 1, 1]} : vector<2x8x64xf32> to vector<2x8x16xf32>
    %110 = arith.truncf %109 : vector<2x8x16xf32> to vector<2x8x16xbf16>
    %111 = vector.extract_strided_slice %46 {offsets = [0, 0, 32], sizes = [2, 8, 16], strides = [1, 1, 1]} : vector<2x8x64xf32> to vector<2x8x16xf32>
    %112 = arith.truncf %111 : vector<2x8x16xf32> to vector<2x8x16xbf16>
    "tpu.trace_start"() <{level = 10 : i32, message = "bqd,bkd->bqk"}> : () -> ()
    %cst_37 = arith.constant dense<0.000000e+00> : vector<2x8x8xf32>
    %113 = tpu.matmul %108, %110, %cst_37 {dimension_numbers = #tpu.dot_dimension_numbers<[2], [2], [1], [1], [0, 0, 0, 1, 1, 1], [0], [0]>} : vector<2x8x16xbf16>, vector<2x8x16xbf16>, vector<2x8x8xf32> -> vector<2x8x8xf32>
    %cst_38 = arith.constant 0xFF800000 : f32
    "tpu.trace_stop"() : () -> ()
    %114 = vector.shape_cast %49 : vector<8x8xi1> to vector<1x8x8xi1>
    %115 = vector.broadcast %114 : vector<1x8x8xi1> to vector<2x8x8xi1>
    %116 = vector.broadcast %cst_38 : f32 to vector<2x8x8xf32>
    %117 = arith.select %115, %116, %113 : vector<2x8x8xi1>, vector<2x8x8xf32>
    %cst_39 = arith.constant dense<0xFF800000> : vector<2x8xf32>
    %118 = vector.multi_reduction <maximumf>, %117, %cst_39 [2] : vector<2x8x8xf32> to vector<2x8xf32>
    %119 = vector.shape_cast %118 : vector<2x8xf32> to vector<2x8x1xf32>
    %120 = vector.broadcast %119 : vector<2x8x1xf32> to vector<2x8x8xf32>
    %121 = arith.subf %117, %120 : vector<2x8x8xf32>
    %122 = math.exp %121 : vector<2x8x8xf32>
    %cst_40 = arith.constant dense<0.000000e+00> : vector<2x8xf32>
    %123 = vector.multi_reduction <add>, %122, %cst_40 [2] : vector<2x8x8xf32> to vector<2x8xf32>
    %124 = vector.shape_cast %123 : vector<2x8xf32> to vector<2x8x1xf32>
    %125 = vector.broadcast %124 : vector<2x8x1xf32> to vector<2x8x8xf32>
    %126 = arith.divf %122, %125 : vector<2x8x8xf32>
    %127 = arith.truncf %126 : vector<2x8x8xf32> to vector<2x8x8xbf16>
    "tpu.trace_start"() <{level = 10 : i32, message = "bqk,bkd->bqd"}> : () -> ()
    %cst_41 = arith.constant dense<0.000000e+00> : vector<2x8x16xf32>
    %128 = tpu.matmul %127, %112, %cst_41 {dimension_numbers = #tpu.dot_dimension_numbers<[2], [1], [1], [2], [0, 0, 0, 1, 1, 2], [0], [0]>} : vector<2x8x8xbf16>, vector<2x8x16xbf16>, vector<2x8x16xf32> -> vector<2x8x16xf32>
    "tpu.trace_stop"() : () -> ()
    %129 = vector.shape_cast %128 : vector<2x8x16xf32> to vector<16x16xf32>
    %130 = arith.truncf %129 : vector<16x16xf32> to vector<16x16xbf16>
    %131 = vector.extract_strided_slice %51 {offsets = [32, 0], sizes = [16, 64], strides = [1, 1]} : vector<64x64xbf16> to vector<16x64xbf16>
    %cst_42 = arith.constant dense<0.000000e+00> : vector<16x64xf32>
    %132 = tpu.matmul %130, %131, %cst_42 {dimension_numbers = #tpu.dot_dimension_numbers<[1], [0], [0], [1], [0, 0, 1, 1], [], []>} : vector<16x16xbf16>, vector<16x64xbf16>, vector<16x64xf32> -> vector<16x64xf32>
    %133 = arith.addf %106, %132 : vector<16x64xf32>
    %134 = vector.extract_strided_slice %44 {offsets = [0, 0, 48], sizes = [2, 8, 16], strides = [1, 1, 1]} : vector<2x8x64xf32> to vector<2x8x16xf32>
    %135 = arith.truncf %134 : vector<2x8x16xf32> to vector<2x8x16xbf16>
    %136 = vector.extract_strided_slice %45 {offsets = [0, 0, 48], sizes = [2, 8, 16], strides = [1, 1, 1]} : vector<2x8x64xf32> to vector<2x8x16xf32>
    %137 = arith.truncf %136 : vector<2x8x16xf32> to vector<2x8x16xbf16>
    %138 = vector.extract_strided_slice %46 {offsets = [0, 0, 48], sizes = [2, 8, 16], strides = [1, 1, 1]} : vector<2x8x64xf32> to vector<2x8x16xf32>
    %139 = arith.truncf %138 : vector<2x8x16xf32> to vector<2x8x16xbf16>
    "tpu.trace_start"() <{level = 10 : i32, message = "bqd,bkd->bqk"}> : () -> ()
    %cst_43 = arith.constant dense<0.000000e+00> : vector<2x8x8xf32>
    %140 = tpu.matmul %135, %137, %cst_43 {dimension_numbers = #tpu.dot_dimension_numbers<[2], [2], [1], [1], [0, 0, 0, 1, 1, 1], [0], [0]>} : vector<2x8x16xbf16>, vector<2x8x16xbf16>, vector<2x8x8xf32> -> vector<2x8x8xf32>
    %cst_44 = arith.constant 0xFF800000 : f32
    "tpu.trace_stop"() : () -> ()
    %141 = vector.shape_cast %49 : vector<8x8xi1> to vector<1x8x8xi1>
    %142 = vector.broadcast %141 : vector<1x8x8xi1> to vector<2x8x8xi1>
    %143 = vector.broadcast %cst_44 : f32 to vector<2x8x8xf32>
    %144 = arith.select %142, %143, %140 : vector<2x8x8xi1>, vector<2x8x8xf32>
    %cst_45 = arith.constant dense<0xFF800000> : vector<2x8xf32>
    %145 = vector.multi_reduction <maximumf>, %144, %cst_45 [2] : vector<2x8x8xf32> to vector<2x8xf32>
    %146 = vector.shape_cast %145 : vector<2x8xf32> to vector<2x8x1xf32>
    %147 = vector.broadcast %146 : vector<2x8x1xf32> to vector<2x8x8xf32>
    %148 = arith.subf %144, %147 : vector<2x8x8xf32>
    %149 = math.exp %148 : vector<2x8x8xf32>
    %cst_46 = arith.constant dense<0.000000e+00> : vector<2x8xf32>
    %150 = vector.multi_reduction <add>, %149, %cst_46 [2] : vector<2x8x8xf32> to vector<2x8xf32>
    %151 = vector.shape_cast %150 : vector<2x8xf32> to vector<2x8x1xf32>
    %152 = vector.broadcast %151 : vector<2x8x1xf32> to vector<2x8x8xf32>
    %153 = arith.divf %149, %152 : vector<2x8x8xf32>
    %154 = arith.truncf %153 : vector<2x8x8xf32> to vector<2x8x8xbf16>
    "tpu.trace_start"() <{level = 10 : i32, message = "bqk,bkd->bqd"}> : () -> ()
    %cst_47 = arith.constant dense<0.000000e+00> : vector<2x8x16xf32>
    %155 = tpu.matmul %154, %139, %cst_47 {dimension_numbers = #tpu.dot_dimension_numbers<[2], [1], [1], [2], [0, 0, 0, 1, 1, 2], [0], [0]>} : vector<2x8x8xbf16>, vector<2x8x16xbf16>, vector<2x8x16xf32> -> vector<2x8x16xf32>
    "tpu.trace_stop"() : () -> ()
    %156 = vector.shape_cast %155 : vector<2x8x16xf32> to vector<16x16xf32>
    %157 = arith.truncf %156 : vector<16x16xf32> to vector<16x16xbf16>
    %158 = vector.extract_strided_slice %51 {offsets = [48, 0], sizes = [16, 64], strides = [1, 1]} : vector<64x64xbf16> to vector<16x64xbf16>
    %cst_48 = arith.constant dense<0.000000e+00> : vector<16x64xf32>
    %159 = tpu.matmul %157, %158, %cst_48 {dimension_numbers = #tpu.dot_dimension_numbers<[1], [0], [0], [1], [0, 0, 1, 1], [], []>} : vector<16x16xbf16>, vector<16x64xbf16>, vector<16x64xf32> -> vector<16x64xf32>
    %160 = arith.addf %133, %159 : vector<16x64xf32>
    %c0_49 = arith.constant 0 : index
    %c0_50 = arith.constant 0 : index
    %c0_51 = arith.constant 0 : index
    %161 = vector.load %arg8[%c0_49, %c0_50, %c0_51] : memref<1x1x64xf32, #tpu.memory_space<vmem>>, vector<1x1x64xf32>
    %162 = vector.shape_cast %161 : vector<1x1x64xf32> to vector<1x64xf32>
    %163 = vector.broadcast %162 : vector<1x64xf32> to vector<16x64xf32>
    %164 = arith.addf %160, %163 : vector<16x64xf32>
    %165 = vector.shape_cast %164 : vector<16x64xf32> to vector<2x8x64xf32>
    %166 = arith.addf %3, %165 : vector<2x8x64xf32>
    %c0_52 = arith.constant 0 : index
    %c0_53 = arith.constant 0 : index
    %c0_54 = arith.constant 0 : index
    %167 = vector.load %arg9[%c0_52, %c0_53, %c0_54] : memref<1x1x64xf32, #tpu.memory_space<vmem>>, vector<1x1x64xf32>
    %168 = vector.shape_cast %167 : vector<1x1x64xf32> to vector<1x64xf32>
    %c0_55 = arith.constant 0 : index
    %c0_56 = arith.constant 0 : index
    %c0_57 = arith.constant 0 : index
    %169 = vector.load %arg10[%c0_55, %c0_56, %c0_57] : memref<1x1x64xf32, #tpu.memory_space<vmem>>, vector<1x1x64xf32>
    %170 = vector.shape_cast %169 : vector<1x1x64xf32> to vector<1x64xf32>
    %cst_58 = arith.constant dense<0.000000e+00> : vector<2x8xf32>
    %171 = vector.multi_reduction <add>, %166, %cst_58 [2] : vector<2x8x64xf32> to vector<2x8xf32>
    %172 = vector.shape_cast %171 : vector<2x8xf32> to vector<2x8x1xf32>
    %cst_59 = arith.constant 6.400000e+01 : f32
    %173 = vector.broadcast %cst_59 : f32 to vector<2x8x1xf32>
    %174 = arith.divf %172, %173 : vector<2x8x1xf32>
    %175 = vector.broadcast %174 : vector<2x8x1xf32> to vector<2x8x64xf32>
    %176 = arith.subf %166, %175 : vector<2x8x64xf32>
    %177 = arith.mulf %176, %176 : vector<2x8x64xf32>
    %cst_60 = arith.constant dense<0.000000e+00> : vector<2x8xf32>
    %178 = vector.multi_reduction <add>, %177, %cst_60 [2] : vector<2x8x64xf32> to vector<2x8xf32>
    %179 = vector.shape_cast %178 : vector<2x8xf32> to vector<2x8x1xf32>
    %cst_61 = arith.constant 6.400000e+01 : f32
    %180 = vector.broadcast %cst_61 : f32 to vector<2x8x1xf32>
    %181 = arith.divf %179, %180 : vector<2x8x1xf32>
    %182 = vector.broadcast %174 : vector<2x8x1xf32> to vector<2x8x64xf32>
    %183 = arith.subf %166, %182 : vector<2x8x64xf32>
    %cst_62 = arith.constant 9.99999974E-6 : f32
    %184 = vector.broadcast %cst_62 : f32 to vector<2x8x1xf32>
    %185 = arith.addf %181, %184 : vector<2x8x1xf32>
    %186 = math.rsqrt %185 : vector<2x8x1xf32>
    %187 = vector.broadcast %186 : vector<2x8x1xf32> to vector<2x8x64xf32>
    %188 = arith.mulf %183, %187 : vector<2x8x64xf32>
    %189 = vector.shape_cast %168 : vector<1x64xf32> to vector<1x1x64xf32>
    %190 = vector.broadcast %189 : vector<1x1x64xf32> to vector<2x8x64xf32>
    %191 = arith.mulf %188, %190 : vector<2x8x64xf32>
    %192 = vector.shape_cast %170 : vector<1x64xf32> to vector<1x1x64xf32>
    %193 = vector.broadcast %192 : vector<1x1x64xf32> to vector<2x8x64xf32>
    %194 = arith.addf %191, %193 : vector<2x8x64xf32>
    %195 = vector.shape_cast %194 : vector<2x8x64xf32> to vector<16x64xf32>
    %196 = arith.truncf %195 : vector<16x64xf32> to vector<16x64xbf16>
    %c0_63 = arith.constant 0 : index
    %c0_64 = arith.constant 0 : index
    %c0_65 = arith.constant 0 : index
    %197 = vector.load %arg11[%c0_63, %c0_64, %c0_65] : memref<1x64x256xbf16, #tpu.memory_space<vmem>>, vector<1x64x256xbf16>
    %198 = vector.shape_cast %197 : vector<1x64x256xbf16> to vector<64x256xbf16>
    %cst_66 = arith.constant dense<0.000000e+00> : vector<16x256xf32>
    %199 = tpu.matmul %196, %198, %cst_66 {dimension_numbers = #tpu.dot_dimension_numbers<[1], [0], [0], [1], [0, 0, 1, 1], [], []>} : vector<16x64xbf16>, vector<64x256xbf16>, vector<16x256xf32> -> vector<16x256xf32>
    %c0_67 = arith.constant 0 : index
    %c0_68 = arith.constant 0 : index
    %c0_69 = arith.constant 0 : index
    %200 = vector.load %arg12[%c0_67, %c0_68, %c0_69] : memref<1x1x256xf32, #tpu.memory_space<vmem>>, vector<1x1x256xf32>
    %201 = vector.shape_cast %200 : vector<1x1x256xf32> to vector<1x256xf32>
    %202 = vector.broadcast %201 : vector<1x256xf32> to vector<16x256xf32>
    %203 = arith.addf %199, %202 : vector<16x256xf32>
    %cst_70 = arith.constant 1.702000e+00 : f32
    %204 = vector.broadcast %cst_70 : f32 to vector<16x256xf32>
    %205 = arith.mulf %204, %203 : vector<16x256xf32>
    %206 = arith.negf %205 : vector<16x256xf32>
    %207 = math.exp %206 : vector<16x256xf32>
    %cst_71 = arith.constant 1.000000e+00 : f32
    %208 = vector.broadcast %cst_71 : f32 to vector<16x256xf32>
    %209 = arith.addf %208, %207 : vector<16x256xf32>
    %210 = arith.divf %208, %209 : vector<16x256xf32>
    %211 = arith.mulf %203, %210 : vector<16x256xf32>
    %212 = arith.truncf %211 : vector<16x256xf32> to vector<16x256xbf16>
    %c0_72 = arith.constant 0 : index
    %c0_73 = arith.constant 0 : index
    %c0_74 = arith.constant 0 : index
    %213 = vector.load %arg13[%c0_72, %c0_73, %c0_74] : memref<1x256x64xbf16, #tpu.memory_space<vmem>>, vector<1x256x64xbf16>
    %214 = vector.shape_cast %213 : vector<1x256x64xbf16> to vector<256x64xbf16>
    %cst_75 = arith.constant dense<0.000000e+00> : vector<16x64xf32>
    %215 = tpu.matmul %212, %214, %cst_75 {dimension_numbers = #tpu.dot_dimension_numbers<[1], [0], [0], [1], [0, 0, 1, 1], [], []>} : vector<16x256xbf16>, vector<256x64xbf16>, vector<16x64xf32> -> vector<16x64xf32>
    %c0_76 = arith.constant 0 : index
    %c0_77 = arith.constant 0 : index
    %c0_78 = arith.constant 0 : index
    %216 = vector.load %arg14[%c0_76, %c0_77, %c0_78] : memref<1x1x64xf32, #tpu.memory_space<vmem>>, vector<1x1x64xf32>
    %217 = vector.shape_cast %216 : vector<1x1x64xf32> to vector<1x64xf32>
    %218 = vector.broadcast %217 : vector<1x64xf32> to vector<16x64xf32>
    %219 = arith.addf %215, %218 : vector<16x64xf32>
    %220 = vector.shape_cast %219 : vector<16x64xf32> to vector<2x8x64xf32>
    %221 = arith.addf %166, %220 : vector<2x8x64xf32>
    %c1_i32 = arith.constant 1 : i32
    %222 = arith.cmpi slt, %arg1, %c1_i32 : i32
    %223 = arith.extui %222 : i1 to i32
    %c0_i32_79 = arith.constant 0 : i32
    %224 = arith.cmpi ne, %223, %c0_i32_79 : i32
    scf.if %224 {
      %c0_82 = arith.constant 0 : index
      %c0_83 = arith.constant 0 : index
      %c0_84 = arith.constant 0 : index
      %228 = vector.load %arg17[%c0_82, %c0_83, %c0_84] : memref<2x8x64xf32, #tpu.memory_space<vmem>>, vector<2x8x64xf32>
      tpu.vector_store %arg17[%c0_82, %c0_83, %c0_84], %221 {strides = array<i32>} : memref<2x8x64xf32, #tpu.memory_space<vmem>>, vector<2x8x64xf32>,
    } else {
    }
    %c1_i32_80 = arith.constant 1 : i32
    %225 = arith.cmpi eq, %arg1, %c1_i32_80 : i32
    %226 = arith.extui %225 : i1 to i32
    %c0_i32_81 = arith.constant 0 : i32
    %227 = arith.cmpi ne, %226, %c0_i32_81 : i32
    scf.if %227 {
      %c0_82 = arith.constant 0 : index
      %c0_83 = arith.constant 0 : index
      %228 = vector.load %arg15[%c0_82, %c0_83] : memref<1x64xf32, #tpu.memory_space<vmem>>, vector<1x64xf32>
      %c0_84 = arith.constant 0 : index
      %c0_85 = arith.constant 0 : index
      %229 = vector.load %arg16[%c0_84, %c0_85] : memref<1x64xf32, #tpu.memory_space<vmem>>, vector<1x64xf32>
      %cst_86 = arith.constant dense<0.000000e+00> : vector<2x8xf32>
      %230 = vector.multi_reduction <add>, %221, %cst_86 [2] : vector<2x8x64xf32> to vector<2x8xf32>
      %231 = vector.shape_cast %230 : vector<2x8xf32> to vector<2x8x1xf32>
      %cst_87 = arith.constant 6.400000e+01 : f32
      %232 = vector.broadcast %cst_87 : f32 to vector<2x8x1xf32>
      %233 = arith.divf %231, %232 : vector<2x8x1xf32>
      %234 = vector.broadcast %233 : vector<2x8x1xf32> to vector<2x8x64xf32>
      %235 = arith.subf %221, %234 : vector<2x8x64xf32>
      %236 = arith.mulf %235, %235 : vector<2x8x64xf32>
      %cst_88 = arith.constant dense<0.000000e+00> : vector<2x8xf32>
      %237 = vector.multi_reduction <add>, %236, %cst_88 [2] : vector<2x8x64xf32> to vector<2x8xf32>
      %238 = vector.shape_cast %237 : vector<2x8xf32> to vector<2x8x1xf32>
      %cst_89 = arith.constant 6.400000e+01 : f32
      %239 = vector.broadcast %cst_89 : f32 to vector<2x8x1xf32>
      %240 = arith.divf %238, %239 : vector<2x8x1xf32>
      %241 = vector.broadcast %233 : vector<2x8x1xf32> to vector<2x8x64xf32>
      %242 = arith.subf %221, %241 : vector<2x8x64xf32>
      %cst_90 = arith.constant 9.99999974E-6 : f32
      %243 = vector.broadcast %cst_90 : f32 to vector<2x8x1xf32>
      %244 = arith.addf %240, %243 : vector<2x8x1xf32>
      %245 = math.rsqrt %244 : vector<2x8x1xf32>
      %246 = vector.broadcast %245 : vector<2x8x1xf32> to vector<2x8x64xf32>
      %247 = arith.mulf %242, %246 : vector<2x8x64xf32>
      %248 = vector.shape_cast %228 : vector<1x64xf32> to vector<1x1x64xf32>
      %249 = vector.broadcast %248 : vector<1x1x64xf32> to vector<2x8x64xf32>
      %250 = arith.mulf %247, %249 : vector<2x8x64xf32>
      %251 = vector.shape_cast %229 : vector<1x64xf32> to vector<1x1x64xf32>
      %252 = vector.broadcast %251 : vector<1x1x64xf32> to vector<2x8x64xf32>
      %253 = arith.addf %250, %252 : vector<2x8x64xf32>
      %c0_91 = arith.constant 0 : index
      %c0_92 = arith.constant 0 : index
      %c0_93 = arith.constant 0 : index
      %254 = vector.load %arg17[%c0_91, %c0_92, %c0_93] : memref<2x8x64xf32, #tpu.memory_space<vmem>>, vector<2x8x64xf32>
      tpu.vector_store %arg17[%c0_91, %c0_92, %c0_93], %253 {strides = array<i32>} : memref<2x8x64xf32, #tpu.memory_space<vmem>>, vector<2x8x64xf32>,
    } else {
    }
    return
  }
  func.func @transform_0(%arg0: i32, %arg1: i32) -> (i32, i32, i32) {
    %c0_i32 = arith.constant 0 : i32
    %c0_i32_0 = arith.constant 0 : i32
    %c0_i32_1 = arith.constant 0 : i32
    return %arg0, %c0_i32, %c0_i32_0 : i32, i32, i32
  }
  func.func @transform_1(%arg0: i32, %arg1: i32) -> (i32, i32, i32) {
    %c0_i32 = arith.constant 0 : i32
    %c0_i32_0 = arith.constant 0 : i32
    %c0_i32_1 = arith.constant 0 : i32
    return %arg1, %c0_i32, %c0_i32_0 : i32, i32, i32
  }
  func.func @transform_2(%arg0: i32, %arg1: i32) -> (i32, i32, i32) {
    %c0_i32 = arith.constant 0 : i32
    %c0_i32_0 = arith.constant 0 : i32
    %c0_i32_1 = arith.constant 0 : i32
    return %arg1, %c0_i32, %c0_i32_0 : i32, i32, i32
  }
  func.func @transform_3(%arg0: i32, %arg1: i32) -> (i32, i32, i32) {
    %c0_i32 = arith.constant 0 : i32
    %c0_i32_0 = arith.constant 0 : i32
    %c0_i32_1 = arith.constant 0 : i32
    return %arg1, %c0_i32, %c0_i32_0 : i32, i32, i32
  }
  func.func @transform_4(%arg0: i32, %arg1: i32) -> (i32, i32, i32) {
    %c0_i32 = arith.constant 0 : i32
    %c0_i32_0 = arith.constant 0 : i32
    %c0_i32_1 = arith.constant 0 : i32
    return %arg1, %c0_i32, %c0_i32_0 : i32, i32, i32
  }
  func.func @transform_5(%arg0: i32, %arg1: i32) -> (i32, i32, i32) {
    %c0_i32 = arith.constant 0 : i32
    %c0_i32_0 = arith.constant 0 : i32
    %c0_i32_1 = arith.constant 0 : i32
    return %arg1, %c0_i32, %c0_i32_0 : i32, i32, i32
  }
  func.func @transform_6(%arg0: i32, %arg1: i32) -> (i32, i32, i32) {
    %c0_i32 = arith.constant 0 : i32
    %c0_i32_0 = arith.constant 0 : i32
    %c0_i32_1 = arith.constant 0 : i32
    return %arg1, %c0_i32, %c0_i32_0 : i32, i32, i32
  }
  func.func @transform_7(%arg0: i32, %arg1: i32) -> (i32, i32, i32) {
    %c0_i32 = arith.constant 0 : i32
    %c0_i32_0 = arith.constant 0 : i32
    %c0_i32_1 = arith.constant 0 : i32
    return %arg1, %c0_i32, %c0_i32_0 : i32, i32, i32
  }
  func.func @transform_8(%arg0: i32, %arg1: i32) -> (i32, i32, i32) {
    %c0_i32 = arith.constant 0 : i32
    %c0_i32_0 = arith.constant 0 : i32
    %c0_i32_1 = arith.constant 0 : i32
    return %arg1, %c0_i32, %c0_i32_0 : i32, i32, i32
  }
  func.func @transform_9(%arg0: i32, %arg1: i32) -> (i32, i32, i32) {
    %c0_i32 = arith.constant 0 : i32
    %c0_i32_0 = arith.constant 0 : i32
    %c0_i32_1 = arith.constant 0 : i32
    return %arg1, %c0_i32, %c0_i32_0 : i32, i32, i32
  }
  func.func @transform_10(%arg0: i32, %arg1: i32) -> (i32, i32, i32) {
    %c0_i32 = arith.constant 0 : i32
    %c0_i32_0 = arith.constant 0 : i32
    %c0_i32_1 = arith.constant 0 : i32
    return %arg1, %c0_i32, %c0_i32_0 : i32, i32, i32
  }
  func.func @transform_11(%arg0: i32, %arg1: i32) -> (i32, i32, i32) {
    %c0_i32 = arith.constant 0 : i32
    %c0_i32_0 = arith.constant 0 : i32
    %c0_i32_1 = arith.constant 0 : i32
    return %arg1, %c0_i32, %c0_i32_0 : i32, i32, i32
  }
  func.func @transform_12(%arg0: i32, %arg1: i32) -> (i32, i32, i32) {
    %c0_i32 = arith.constant 0 : i32
    %c0_i32_0 = arith.constant 0 : i32
    %c0_i32_1 = arith.constant 0 : i32
    return %arg1, %c0_i32, %c0_i32_0 : i32, i32, i32
  }
  func.func @transform_13(%arg0: i32, %arg1: i32) -> (i32, i32) {
    %c0_i32 = arith.constant 0 : i32
    %c0_i32_0 = arith.constant 0 : i32
    %c0_i32_1 = arith.constant 0 : i32
    return %c0_i32, %c0_i32_0 : i32, i32
  }
  func.func @transform_14(%arg0: i32, %arg1: i32) -> (i32, i32) {
    %c0_i32 = arith.constant 0 : i32
    %c0_i32_0 = arith.constant 0 : i32
    %c0_i32_1 = arith.constant 0 : i32
    return %c0_i32, %c0_i32_0 : i32, i32
  }
  func.func @transform_15(%arg0: i32, %arg1: i32) -> (i32, i32, i32) {
    %c0_i32 = arith.constant 0 : i32
    %c0_i32_0 = arith.constant 0 : i32
    %c0_i32_1 = arith.constant 0 : i32
    return %arg0, %c0_i32, %c0_i32_0 : i32, i32, i32
  }
}

</mosaic_0001>

<llo_original>
// kernel: tpu_custom_call.1
$region0: #{tpu_custom_call.1}
  #allocation0 [shape = 'u32[]', space=smem, size = 0x4, offset = 0x4, fixed_abs, tag = 'smem constant byte address 0x4 - core index']
  #allocation1 [shape = 'u32[144,128]{1,0:T(1,128)}', space=vmem, size = 0x12000, scoped, tag = 'internal scratch']
  %s0 = inlined_call_operand.vmem [shape: f32[2,8,64], index: 0, kind: input, shape index: {}]
  %s1 = inlined_call_operand.vmem [shape: f32[2,1,64], index: 1, kind: input, shape index: {}]
  %s2 = inlined_call_operand.vmem [shape: f32[2,1,64], index: 2, kind: input, shape index: {}]
  %s3 = inlined_call_operand.vmem [shape: bf16[2,64,192], index: 3, kind: input, shape index: {}]
  %s4 = inlined_call_operand.vmem [shape: f32[2,1,192], index: 4, kind: input, shape index: {}]
  %s5 = inlined_call_operand.vmem [shape: bf16[2,64,64], index: 5, kind: input, shape index: {}]
  %s6 = inlined_call_operand.vmem [shape: f32[2,1,64], index: 6, kind: input, shape index: {}]
  %s7 = inlined_call_operand.vmem [shape: f32[2,1,64], index: 7, kind: input, shape index: {}]
  %s8 = inlined_call_operand.vmem [shape: f32[2,1,64], index: 8, kind: input, shape index: {}]
  %s9 = inlined_call_operand.vmem [shape: bf16[2,64,256], index: 9, kind: input, shape index: {}]
  %s10 = inlined_call_operand.vmem [shape: f32[2,1,256], index: 10, kind: input, shape index: {}]
  %s11 = inlined_call_operand.vmem [shape: bf16[2,256,64], index: 11, kind: input, shape index: {}]
  %s12 = inlined_call_operand.vmem [shape: f32[2,1,64], index: 12, kind: input, shape index: {}]
  %s13 = inlined_call_operand.vmem [shape: f32[1,64], index: 13, kind: input, shape index: {}]
  %s14 = inlined_call_operand.vmem [shape: f32[1,64], index: 14, kind: input, shape index: {}]
  %s15 = inlined_call_operand.hbm [shape: f32[2,8,64], index: 15, kind: output, shape index: {}]
  %s16 = sld [smem:[#allocation0]]
  $region105: #{tpu_custom_call.1} parent=0
    _
  %s18 = ssub.s32 1, %s16
  %s19 = scalar_select 0, %s18, %s16
  $region1: #{tpu_custom_call.1} parent=0
    #allocation2 [shape = 'u8[8192]{0}', space=vmem, size = 0x2000, scoped, tag = 'output window, operand 0, single buffered']
    #allocation3 [shape = 's32[2]{0}', space=sflag, size = 0x8, scoped, tag = 'scoped memory for tpu_custom_call.1']
    %20 = vsyncpa [#allocation3], 0
    loop: start=0, step=1, limit=4
    $region2: #{tpu_custom_call.1} parent=1 // loop_pre_header
      _
    $region3: #{tpu_custom_call.1} parent=1 // loop_header
      %s22 = sphi 0, %s26
      %p23 = scmp.ge.s32.totalorder %s22, 4
      %s29 = sphi 0, %s41
      %s30 = sphi 0, %s37
      %s31 = sphi 0, %s29
      %s32 = sphi 0, %s30
      %s33 = sphi 0, %s31
      %s34 = sphi 0, %s32
      %s44 = sphi 0, %s46
      %s47 = sphi 0, %s44
      %s48 = sphi 0, %s47
      %s64 = sphi 0, %s48
      %s70 = sphi 0, %s72
      %s73 = sphi 0, %s70
      %s74 = sphi 0, %s73
      %s90 = sphi 0, %s74
      %s96 = sphi 0, %s98
      %s99 = sphi 0, %s96
      %s100 = sphi 0, %s99
      %s116 = sphi 0, %s100
      %s122 = sphi 0, %s124
      %s125 = sphi 0, %s122
      %s126 = sphi 0, %s125
      %s142 = sphi 0, %s126
      %s148 = sphi 0, %s150
      %s151 = sphi 0, %s148
      %s152 = sphi 0, %s151
      %s168 = sphi 0, %s152
      %s174 = sphi 0, %s176
      %s177 = sphi 0, %s174
      %s178 = sphi 0, %s177
      %s194 = sphi 0, %s178
      %s200 = sphi 0, %s202
      %s203 = sphi 0, %s200
      %s204 = sphi 0, %s203
      %s220 = sphi 0, %s204
      %s226 = sphi 0, %s228
      %s229 = sphi 0, %s226
      %s230 = sphi 0, %s229
      %s246 = sphi 0, %s230
      %s252 = sphi 0, %s254
      %s255 = sphi 0, %s252
      %s256 = sphi 0, %s255
      %s272 = sphi 0, %s256
      %s278 = sphi 0, %s280
      %s281 = sphi 0, %s278
      %s282 = sphi 0, %s281
      %s298 = sphi 0, %s282
      %s304 = sphi 0, %s306
      %s307 = sphi 0, %s304
      %s308 = sphi 0, %s307
      %s324 = sphi 0, %s308
      %s330 = sphi 0, %s332
      %s333 = sphi 0, %s330
      %s334 = sphi 0, %s333
      %s350 = sphi 0, %s334
      %s356 = sphi 0, %s358
      %s359 = sphi 0, %s356
      %s360 = sphi 0, %s359
      %s376 = sphi 0, %s360
      %s380 = sphi 0, %s380
      %s382 = sphi 0, %s380
      %s383 = sphi 0, %s382
      %s397 = sphi 0, %s383
      %s401 = sphi 0, %s401
      %s403 = sphi 0, %s401
      %s404 = sphi 0, %s403
      %s418 = sphi 0, %s404
      %s424 = sphi 0, %s426
      %s427 = sphi 0, %s424
      %s428 = sphi 0, %s427
      %s444 = sphi 0, %s428
    $region4: #{tpu_custom_call.1} parent=1 // loop_header_branch
      %25 = sbr.rel (%p23) target = $region8
    $region5: #{tpu_custom_call.1} parent=1 // loop_body
      %s27 = ssub.s32 %s22, 1
      %s28 = ssub.s32 %s22, 2
      %s35 = sadd.s32 1, %s30
      %p36 = scmp.ge.s32.totalorder %s35, 2
      %s37 = scalar_select %p36, 0, %s35
      %s38 = sadd.s32 1, %s29
      %s39 = scalar_select %p36, %s38, %s29
      %p40 = scmp.ge.s32.totalorder %s39, 1
      %s41 = scalar_select %p40, 0, %s39
      %s42 = ssub.s32 %s29, %s41
      %p43 = scmp.eq.s32.totalorder %s42, 0
      %s45 = sadd.s32 %s44, 1
      %s46 = scalar_select %p43, %s44, %s45
      %p49 = pneg %p43
      %p50 = scmp.eq.s32.totalorder %s22, 1
      %p51 = por %p49, %p50
      %p52 = scmp.ne.s32.totalorder %s44, %s47
      %p53 = scmp.eq.s32.totalorder %s22, 0
      %p54 = por %p52, %p53
      %p55 = scmp.ne.s32.totalorder %s44, %s47
      %p56 = scmp.eq.s32.totalorder %s27, 1
      %p57 = por %p55, %p56
      %p58 = scmp.ne.s32.totalorder %s47, %s48
      %p59 = scmp.eq.s32.totalorder %s27, 0
      %p60 = por %p58, %p59
      %p61 = scmp.ne.s32.totalorder %s47, %s48
      %p62 = scmp.eq.s32.totalorder %s28, 1
      %p63 = por %p61, %p62
      %p65 = scmp.ne.s32.totalorder %s48, %s64
      %p66 = scmp.eq.s32.totalorder %s28, 0
      %p67 = por %p65, %p66
      %s68 = ssub.s32 %s30, %s37
      %p69 = scmp.eq.s32.totalorder %s68, 0
      %s71 = sadd.s32 %s70, 1
      %s72 = scalar_select %p69, %s70, %s71
      %p75 = pneg %p69
      %p76 = scmp.eq.s32.totalorder %s22, 1
      %p77 = por %p75, %p76
      %p78 = scmp.ne.s32.totalorder %s70, %s73
      %p79 = scmp.eq.s32.totalorder %s22, 0
      %p80 = por %p78, %p79
      %p81 = scmp.ne.s32.totalorder %s70, %s73
      %p82 = scmp.eq.s32.totalorder %s27, 1
      %p83 = por %p81, %p82
      %p84 = scmp.ne.s32.totalorder %s73, %s74
      %p85 = scmp.eq.s32.totalorder %s27, 0
      %p86 = por %p84, %p85
      %p87 = scmp.ne.s32.totalorder %s73, %s74
      %p88 = scmp.eq.s32.totalorder %s28, 1
      %p89 = por %p87, %p88
      %p91 = scmp.ne.s32.totalorder %s74, %s90
      %p92 = scmp.eq.s32.totalorder %s28, 0
      %p93 = por %p91, %p92
      %s94 = ssub.s32 %s30, %s37
      %p95 = scmp.eq.s32.totalorder %s94, 0
      %s97 = sadd.s32 %s96, 1
      %s98 = scalar_select %p95, %s96, %s97
      %p101 = pneg %p95
      %p102 = scmp.eq.s32.totalorder %s22, 1
      %p103 = por %p101, %p102
      %p104 = scmp.ne.s32.totalorder %s96, %s99
      %p105 = scmp.eq.s32.totalorder %s22, 0
      %p106 = por %p104, %p105
      %p107 = scmp.ne.s32.totalorder %s96, %s99
      %p108 = scmp.eq.s32.totalorder %s27, 1
      %p109 = por %p107, %p108
      %p110 = scmp.ne.s32.totalorder %s99, %s100
      %p111 = scmp.eq.s32.totalorder %s27, 0
      %p112 = por %p110, %p111
      %p113 = scmp.ne.s32.totalorder %s99, %s100
      %p114 = scmp.eq.s32.totalorder %s28, 1
      %p115 = por %p113, %p114
      %p117 = scmp.ne.s32.totalorder %s100, %s116
      %p118 = scmp.eq.s32.totalorder %s28, 0
      %p119 = por %p117, %p118
      %s120 = ssub.s32 %s30, %s37
      %p121 = scmp.eq.s32.totalorder %s120, 0
      %s123 = sadd.s32 %s122, 1
      %s124 = scalar_select %p121, %s122, %s123
      %p127 = pneg %p121
      %p128 = scmp.eq.s32.totalorder %s22, 1
      %p129 = por %p127, %p128
      %p130 = scmp.ne.s32.totalorder %s122, %s125
      %p131 = scmp.eq.s32.totalorder %s22, 0
      %p132 = por %p130, %p131
      %p133 = scmp.ne.s32.totalorder %s122, %s125
      %p134 = scmp.eq.s32.totalorder %s27, 1
      %p135 = por %p133, %p134
      %p136 = scmp.ne.s32.totalorder %s125, %s126
      %p137 = scmp.eq.s32.totalorder %s27, 0
      %p138 = por %p136, %p137
      %p139 = scmp.ne.s32.totalorder %s125, %s126
      %p140 = scmp.eq.s32.totalorder %s28, 1
      %p141 = por %p139, %p140
      %p143 = scmp.ne.s32.totalorder %s126, %s142
      %p144 = scmp.eq.s32.totalorder %s28, 0
      %p145 = por %p143, %p144
      %s146 = ssub.s32 %s30, %s37
      %p147 = scmp.eq.s32.totalorder %s146, 0
      %s149 = sadd.s32 %s148, 1
      %s150 = scalar_select %p147, %s148, %s149
      %p153 = pneg %p147
      %p154 = scmp.eq.s32.totalorder %s22, 1
      %p155 = por %p153, %p154
      %p156 = scmp.ne.s32.totalorder %s148, %s151
      %p157 = scmp.eq.s32.totalorder %s22, 0
      %p158 = por %p156, %p157
      %p159 = scmp.ne.s32.totalorder %s148, %s151
      %p160 = scmp.eq.s32.totalorder %s27, 1
      %p161 = por %p159, %p160
      %p162 = scmp.ne.s32.totalorder %s151, %s152
      %p163 = scmp.eq.s32.totalorder %s27, 0
      %p164 = por %p162, %p163
      %p165 = scmp.ne.s32.totalorder %s151, %s152
      %p166 = scmp.eq.s32.totalorder %s28, 1
      %p167 = por %p165, %p166
      %p169 = scmp.ne.s32.totalorder %s152, %s168
      %p170 = scmp.eq.s32.totalorder %s28, 0
      %p171 = por %p169, %p170
      %s172 = ssub.s32 %s30, %s37
      %p173 = scmp.eq.s32.totalorder %s172, 0
      %s175 = sadd.s32 %s174, 1
      %s176 = scalar_select %p173, %s174, %s175
      %p179 = pneg %p173
      %p180 = scmp.eq.s32.totalorder %s22, 1
      %p181 = por %p179, %p180
      %p182 = scmp.ne.s32.totalorder %s174, %s177
      %p183 = scmp.eq.s32.totalorder %s22, 0
      %p184 = por %p182, %p183
      %p185 = scmp.ne.s32.totalorder %s174, %s177
      %p186 = scmp.eq.s32.totalorder %s27, 1
      %p187 = por %p185, %p186
      %p188 = scmp.ne.s32.totalorder %s177, %s178
      %p189 = scmp.eq.s32.totalorder %s27, 0
      %p190 = por %p188, %p189
      %p191 = scmp.ne.s32.totalorder %s177, %s178
      %p192 = scmp.eq.s32.totalorder %s28, 1
      %p193 = por %p191, %p192
      %p195 = scmp.ne.s32.totalorder %s178, %s194
      %p196 = scmp.eq.s32.totalorder %s28, 0
      %p197 = por %p195, %p196
      %s198 = ssub.s32 %s30, %s37
      %p199 = scmp.eq.s32.totalorder %s198, 0
      %s201 = sadd.s32 %s200, 1
      %s202 = scalar_select %p199, %s200, %s201
      %p205 = pneg %p199
      %p206 = scmp.eq.s32.totalorder %s22, 1
      %p207 = por %p205, %p206
      %p208 = scmp.ne.s32.totalorder %s200, %s203
      %p209 = scmp.eq.s32.totalorder %s22, 0
      %p210 = por %p208, %p209
      %p211 = scmp.ne.s32.totalorder %s200, %s203
      %p212 = scmp.eq.s32.totalorder %s27, 1
      %p213 = por %p211, %p212
      %p214 = scmp.ne.s32.totalorder %s203, %s204
      %p215 = scmp.eq.s32.totalorder %s27, 0
      %p216 = por %p214, %p215
      %p217 = scmp.ne.s32.totalorder %s203, %s204
      %p218 = scmp.eq.s32.totalorder %s28, 1
      %p219 = por %p217, %p218
      %p221 = scmp.ne.s32.totalorder %s204, %s220
      %p222 = scmp.eq.s32.totalorder %s28, 0
      %p223 = por %p221, %p222
      %s224 = ssub.s32 %s30, %s37
      %p225 = scmp.eq.s32.totalorder %s224, 0
      %s227 = sadd.s32 %s226, 1
      %s228 = scalar_select %p225, %s226, %s227
      %p231 = pneg %p225
      %p232 = scmp.eq.s32.totalorder %s22, 1
      %p233 = por %p231, %p232
      %p234 = scmp.ne.s32.totalorder %s226, %s229
      %p235 = scmp.eq.s32.totalorder %s22, 0
      %p236 = por %p234, %p235
      %p237 = scmp.ne.s32.totalorder %s226, %s229
      %p238 = scmp.eq.s32.totalorder %s27, 1
      %p239 = por %p237, %p238
      %p240 = scmp.ne.s32.totalorder %s229, %s230
      %p241 = scmp.eq.s32.totalorder %s27, 0
      %p242 = por %p240, %p241
      %p243 = scmp.ne.s32.totalorder %s229, %s230
      %p244 = scmp.eq.s32.totalorder %s28, 1
      %p245 = por %p243, %p244
      %p247 = scmp.ne.s32.totalorder %s230, %s246
      %p248 = scmp.eq.s32.totalorder %s28, 0
      %p249 = por %p247, %p248
      %s250 = ssub.s32 %s30, %s37
      %p251 = scmp.eq.s32.totalorder %s250, 0
      %s253 = sadd.s32 %s252, 1
      %s254 = scalar_select %p251, %s252, %s253
      %p257 = pneg %p251
      %p258 = scmp.eq.s32.totalorder %s22, 1
      %p259 = por %p257, %p258
      %p260 = scmp.ne.s32.totalorder %s252, %s255
      %p261 = scmp.eq.s32.totalorder %s22, 0
      %p262 = por %p260, %p261
      %p263 = scmp.ne.s32.totalorder %s252, %s255
      %p264 = scmp.eq.s32.totalorder %s27, 1
      %p265 = por %p263, %p264
      %p266 = scmp.ne.s32.totalorder %s255, %s256
      %p267 = scmp.eq.s32.totalorder %s27, 0
      %p268 = por %p266, %p267
      %p269 = scmp.ne.s32.totalorder %s255, %s256
      %p270 = scmp.eq.s32.totalorder %s28, 1
      %p271 = por %p269, %p270
      %p273 = scmp.ne.s32.totalorder %s256, %s272
      %p274 = scmp.eq.s32.totalorder %s28, 0
      %p275 = por %p273, %p274
      %s276 = ssub.s32 %s30, %s37
      %p277 = scmp.eq.s32.totalorder %s276, 0
      %s279 = sadd.s32 %s278, 1
      %s280 = scalar_select %p277, %s278, %s279
      %p283 = pneg %p277
      %p284 = scmp.eq.s32.totalorder %s22, 1
      %p285 = por %p283, %p284
      %p286 = scmp.ne.s32.totalorder %s278, %s281
      %p287 = scmp.eq.s32.totalorder %s22, 0
      %p288 = por %p286, %p287
      %p289 = scmp.ne.s32.totalorder %s278, %s281
      %p290 = scmp.eq.s32.totalorder %s27, 1
      %p291 = por %p289, %p290
      %p292 = scmp.ne.s32.totalorder %s281, %s282
      %p293 = scmp.eq.s32.totalorder %s27, 0
      %p294 = por %p292, %p293
      %p295 = scmp.ne.s32.totalorder %s281, %s282
      %p296 = scmp.eq.s32.totalorder %s28, 1
      %p297 = por %p295, %p296
      %p299 = scmp.ne.s32.totalorder %s282, %s298
      %p300 = scmp.eq.s32.totalorder %s28, 0
      %p301 = por %p299, %p300
      %s302 = ssub.s32 %s30, %s37
      %p303 = scmp.eq.s32.totalorder %s302, 0
      %s305 = sadd.s32 %s304, 1
      %s306 = scalar_select %p303, %s304, %s305
      %p309 = pneg %p303
      %p310 = scmp.eq.s32.totalorder %s22, 1
      %p311 = por %p309, %p310
      %p312 = scmp.ne.s32.totalorder %s304, %s307
      %p313 = scmp.eq.s32.totalorder %s22, 0
      %p314 = por %p312, %p313
      %p315 = scmp.ne.s32.totalorder %s304, %s307
      %p316 = scmp.eq.s32.totalorder %s27, 1
      %p317 = por %p315, %p316
      %p318 = scmp.ne.s32.totalorder %s307, %s308
      %p319 = scmp.eq.s32.totalorder %s27, 0
      %p320 = por %p318, %p319
      %p321 = scmp.ne.s32.totalorder %s307, %s308
      %p322 = scmp.eq.s32.totalorder %s28, 1
      %p323 = por %p321, %p322
      %p325 = scmp.ne.s32.totalorder %s308, %s324
      %p326 = scmp.eq.s32.totalorder %s28, 0
      %p327 = por %p325, %p326
      %s328 = ssub.s32 %s30, %s37
      %p329 = scmp.eq.s32.totalorder %s328, 0
      %s331 = sadd.s32 %s330, 1
      %s332 = scalar_select %p329, %s330, %s331
      %p335 = pneg %p329
      %p336 = scmp.eq.s32.totalorder %s22, 1
      %p337 = por %p335, %p336
      %p338 = scmp.ne.s32.totalorder %s330, %s333
      %p339 = scmp.eq.s32.totalorder %s22, 0
      %p340 = por %p338, %p339
      %p341 = scmp.ne.s32.totalorder %s330, %s333
      %p342 = scmp.eq.s32.totalorder %s27, 1
      %p343 = por %p341, %p342
      %p344 = scmp.ne.s32.totalorder %s333, %s334
      %p345 = scmp.eq.s32.totalorder %s27, 0
      %p346 = por %p344, %p345
      %p347 = scmp.ne.s32.totalorder %s333, %s334
      %p348 = scmp.eq.s32.totalorder %s28, 1
      %p349 = por %p347, %p348
      %p351 = scmp.ne.s32.totalorder %s334, %s350
      %p352 = scmp.eq.s32.totalorder %s28, 0
      %p353 = por %p351, %p352
      %s354 = ssub.s32 %s30, %s37
      %p355 = scmp.eq.s32.totalorder %s354, 0
      %s357 = sadd.s32 %s356, 1
      %s358 = scalar_select %p355, %s356, %s357
      %p361 = pneg %p355
      %p362 = scmp.eq.s32.totalorder %s22, 1
      %p363 = por %p361, %p362
      %p364 = scmp.ne.s32.totalorder %s356, %s359
      %p365 = scmp.eq.s32.totalorder %s22, 0
      %p366 = por %p364, %p365
      %p367 = scmp.ne.s32.totalorder %s356, %s359
      %p368 = scmp.eq.s32.totalorder %s27, 1
      %p369 = por %p367, %p368
      %p370 = scmp.ne.s32.totalorder %s359, %s360
      %p371 = scmp.eq.s32.totalorder %s27, 0
      %p372 = por %p370, %p371
      %p373 = scmp.ne.s32.totalorder %s359, %s360
      %p374 = scmp.eq.s32.totalorder %s28, 1
      %p375 = por %p373, %p374
      %p377 = scmp.ne.s32.totalorder %s360, %s376
      %p378 = scmp.eq.s32.totalorder %s28, 0
      %p379 = por %p377, %p378
      %s381 = sadd.s32 %s380, 1
      %p384 = scmp.eq.s32.totalorder %s22, 1
      %p385 = scmp.ne.s32.totalorder %s380, %s382
      %p386 = scmp.eq.s32.totalorder %s22, 0
      %p387 = por %p385, %p386
      %p388 = scmp.ne.s32.totalorder %s380, %s382
      %p389 = scmp.eq.s32.totalorder %s27, 1
      %p390 = por %p388, %p389
      %p391 = scmp.ne.s32.totalorder %s382, %s383
      %p392 = scmp.eq.s32.totalorder %s27, 0
      %p393 = por %p391, %p392
      %p394 = scmp.ne.s32.totalorder %s382, %s383
      %p395 = scmp.eq.s32.totalorder %s28, 1
      %p396 = por %p394, %p395
      %p398 = scmp.ne.s32.totalorder %s383, %s397
      %p399 = scmp.eq.s32.totalorder %s28, 0
      %p400 = por %p398, %p399
      %s402 = sadd.s32 %s401, 1
      %p405 = scmp.eq.s32.totalorder %s22, 1
      %p406 = scmp.ne.s32.totalorder %s401, %s403
      %p407 = scmp.eq.s32.totalorder %s22, 0
      %p408 = por %p406, %p407
      %p409 = scmp.ne.s32.totalorder %s401, %s403
      %p410 = scmp.eq.s32.totalorder %s27, 1
      %p411 = por %p409, %p410
      %p412 = scmp.ne.s32.totalorder %s403, %s404
      %p413 = scmp.eq.s32.totalorder %s27, 0
      %p414 = por %p412, %p413
      %p415 = scmp.ne.s32.totalorder %s403, %s404
      %p416 = scmp.eq.s32.totalorder %s28, 1
      %p417 = por %p415, %p416
      %p419 = scmp.ne.s32.totalorder %s404, %s418
      %p420 = scmp.eq.s32.totalorder %s28, 0
      %p421 = por %p419, %p420
      %s422 = ssub.s32 %s29, %s41
      %p423 = scmp.eq.s32.totalorder %s422, 0
      %s425 = sadd.s32 %s424, 1
      %s426 = scalar_select %p423, %s424, %s425
      %p429 = pneg %p423
      %p430 = scmp.eq.s32.totalorder %s22, 1
      %p431 = por %p429, %p430
      %p432 = scmp.ne.s32.totalorder %s424, %s427
      %p433 = scmp.eq.s32.totalorder %s22, 0
      %p434 = por %p432, %p433
      %p435 = scmp.ne.s32.totalorder %s424, %s427
      %p436 = scmp.eq.s32.totalorder %s27, 1
      %p437 = por %p435, %p436
      %p438 = scmp.ne.s32.totalorder %s427, %s428
      %p439 = scmp.eq.s32.totalorder %s27, 0
      %p440 = por %p438, %p439
      %p441 = scmp.ne.s32.totalorder %s427, %s428
      %p442 = scmp.eq.s32.totalorder %s28, 1
      %p443 = por %p441, %p442
      %p445 = scmp.ne.s32.totalorder %s428, %s444
      %p446 = scmp.eq.s32.totalorder %s28, 0
      %p447 = por %p445, %p446
      %p448 = scmp.le.s32.totalorder 1, %s22
      %p449 = scmp.lt.s32.totalorder %s22, 3
      %p450 = pnand %p448, %p449
      %p451 = pneg %p450
      // Predicated region
      $region9: #{tpu_custom_call.1} parent=5 // pred_check
        _
      $region10: #{tpu_custom_call.1} parent=5 // pred_check_branch
        %453 = sbr.rel (%p450) target = $region12
      $region11: #{tpu_custom_call.1} parent=5 // pred_region
        %s454 = ssub.s32 %s22, 1
        // Predicated region
        $region13: #{tpu_custom_call.1} parent=11 // pred_check
          %p455 = pneg %p60
        $region14: #{tpu_custom_call.1} parent=11 // pred_check_branch
          %457 = sbr.rel (%p455) target = $region16
        $region15: #{tpu_custom_call.1} parent=11 // pred_region
          %s458 = smul.u32 2, %s31
          %p459 = scmp.lt.s32.totalorder %s458, 1
          %s460 = scalar_select %p459, %s458, 1
          %s461 = smul.addr %s460, 8
          %s462 = scalar_lea.vmem %s0, %s461
          %s463 = smul.u32 2, %s31
        $region16: #{tpu_custom_call.1} parent=11 // pred_fallthru
          _
        // Predicated region
        $region17: #{tpu_custom_call.1} parent=11 // pred_check
          %p464 = pneg %p393
        $region18: #{tpu_custom_call.1} parent=11 // pred_check_branch
          %466 = sbr.rel (%p464) target = $region20
        $region19: #{tpu_custom_call.1} parent=11 // pred_region
          _
        $region20: #{tpu_custom_call.1} parent=11 // pred_fallthru
          _
        // Predicated region
        $region21: #{tpu_custom_call.1} parent=11 // pred_check
          %p467 = pneg %p414
        $region22: #{tpu_custom_call.1} parent=11 // pred_check_branch
          %469 = sbr.rel (%p467) target = $region24
        $region23: #{tpu_custom_call.1} parent=11 // pred_region
          _
        $region24: #{tpu_custom_call.1} parent=11 // pred_fallthru
          _
      $region12: #{tpu_custom_call.1} parent=5 // pred_fallthru
        _
      %p470 = scmp.lt.s32.totalorder %s22, 2
      // Predicated region
      $region25: #{tpu_custom_call.1} parent=5 // pred_check
        %p471 = pneg %p470
      $region26: #{tpu_custom_call.1} parent=5 // pred_check_branch
        %473 = sbr.rel (%p471) target = $region28
      $region27: #{tpu_custom_call.1} parent=5 // pred_region
        // Predicated region
        $region29: #{tpu_custom_call.1} parent=27 // pred_check
          %p474 = pneg %p80
        $region30: #{tpu_custom_call.1} parent=27 // pred_check_branch
          %476 = sbr.rel (%p474) target = $region32
        $region31: #{tpu_custom_call.1} parent=27 // pred_region
          %p477 = scmp.lt.s32.totalorder %s30, 1
          %s478 = scalar_select %p477, %s30, 1
          %s479 = scalar_lea.vmem %s1, %s478
        $region32: #{tpu_custom_call.1} parent=27 // pred_fallthru
          _
        // Predicated region
        $region33: #{tpu_custom_call.1} parent=27 // pred_check
          %p480 = pneg %p106
        $region34: #{tpu_custom_call.1} parent=27 // pred_check_branch
          %482 = sbr.rel (%p480) target = $region36
        $region35: #{tpu_custom_call.1} parent=27 // pred_region
          %p483 = scmp.lt.s32.totalorder %s30, 1
          %s484 = scalar_select %p483, %s30, 1
          %s485 = scalar_lea.vmem %s2, %s484
        $region36: #{tpu_custom_call.1} parent=27 // pred_fallthru
          _
        // Predicated region
        $region37: #{tpu_custom_call.1} parent=27 // pred_check
          %p486 = pneg %p132
        $region38: #{tpu_custom_call.1} parent=27 // pred_check_branch
          %488 = sbr.rel (%p486) target = $region40
        $region39: #{tpu_custom_call.1} parent=27 // pred_region
          %p489 = scmp.lt.s32.totalorder %s30, 1
          %s490 = scalar_select %p489, %s30, 1
          %s491 = smul.addr %s490, 16
          %s492 = smul.addr %s491, 4
          %s493 = scalar_lea.vmem %s3, %s492
        $region40: #{tpu_custom_call.1} parent=27 // pred_fallthru
          _
        // Predicated region
        $region41: #{tpu_custom_call.1} parent=27 // pred_check
          %p494 = pneg %p158
        $region42: #{tpu_custom_call.1} parent=27 // pred_check_branch
          %496 = sbr.rel (%p494) target = $region44
        $region43: #{tpu_custom_call.1} parent=27 // pred_region
          %p497 = scmp.lt.s32.totalorder %s30, 1
          %s498 = scalar_select %p497, %s30, 1
          %s499 = smul.addr %s498, 2
          %s500 = scalar_lea.vmem %s4, %s499
        $region44: #{tpu_custom_call.1} parent=27 // pred_fallthru
          _
        // Predicated region
        $region45: #{tpu_custom_call.1} parent=27 // pred_check
          %p501 = pneg %p184
        $region46: #{tpu_custom_call.1} parent=27 // pred_check_branch
          %503 = sbr.rel (%p501) target = $region48
        $region47: #{tpu_custom_call.1} parent=27 // pred_region
          %p504 = scmp.lt.s32.totalorder %s30, 1
          %s505 = scalar_select %p504, %s30, 1
          %s506 = smul.addr %s505, 8
          %s507 = smul.addr %s506, 4
          %s508 = scalar_lea.vmem %s5, %s507
        $region48: #{tpu_custom_call.1} parent=27 // pred_fallthru
          _
        // Predicated region
        $region49: #{tpu_custom_call.1} parent=27 // pred_check
          %p509 = pneg %p210
        $region50: #{tpu_custom_call.1} parent=27 // pred_check_branch
          %511 = sbr.rel (%p509) target = $region52
        $region51: #{tpu_custom_call.1} parent=27 // pred_region
          %p512 = scmp.lt.s32.totalorder %s30, 1
          %s513 = scalar_select %p512, %s30, 1
          %s514 = scalar_lea.vmem %s6, %s513
        $region52: #{tpu_custom_call.1} parent=27 // pred_fallthru
          _
        // Predicated region
        $region53: #{tpu_custom_call.1} parent=27 // pred_check
          %p515 = pneg %p236
        $region54: #{tpu_custom_call.1} parent=27 // pred_check_branch
          %517 = sbr.rel (%p515) target = $region56
        $region55: #{tpu_custom_call.1} parent=27 // pred_region
          %p518 = scmp.lt.s32.totalorder %s30, 1
          %s519 = scalar_select %p518, %s30, 1
          %s520 = scalar_lea.vmem %s7, %s519
        $region56: #{tpu_custom_call.1} parent=27 // pred_fallthru
          _
        // Predicated region
        $region57: #{tpu_custom_call.1} parent=27 // pred_check
          %p521 = pneg %p262
        $region58: #{tpu_custom_call.1} parent=27 // pred_check_branch
          %523 = sbr.rel (%p521) target = $region60
        $region59: #{tpu_custom_call.1} parent=27 // pred_region
          %p524 = scmp.lt.s32.totalorder %s30, 1
          %s525 = scalar_select %p524, %s30, 1
          %s526 = scalar_lea.vmem %s8, %s525
        $region60: #{tpu_custom_call.1} parent=27 // pred_fallthru
          _
        // Predicated region
        $region61: #{tpu_custom_call.1} parent=27 // pred_check
          %p527 = pneg %p288
        $region62: #{tpu_custom_call.1} parent=27 // pred_check_branch
          %529 = sbr.rel (%p527) target = $region64
        $region63: #{tpu_custom_call.1} parent=27 // pred_region
          %p530 = scmp.lt.s32.totalorder %s30, 1
          %s531 = scalar_select %p530, %s30, 1
          %s532 = smul.addr %s531, 16
          %s533 = smul.addr %s532, 4
          %s534 = scalar_lea.vmem %s9, %s533
        $region64: #{tpu_custom_call.1} parent=27 // pred_fallthru
          _
        // Predicated region
        $region65: #{tpu_custom_call.1} parent=27 // pred_check
          %p535 = pneg %p314
        $region66: #{tpu_custom_call.1} parent=27 // pred_check_branch
          %537 = sbr.rel (%p535) target = $region68
        $region67: #{tpu_custom_call.1} parent=27 // pred_region
          %p538 = scmp.lt.s32.totalorder %s30, 1
          %s539 = scalar_select %p538, %s30, 1
          %s540 = smul.addr %s539, 2
          %s541 = scalar_lea.vmem %s10, %s540
        $region68: #{tpu_custom_call.1} parent=27 // pred_fallthru
          _
        // Predicated region
        $region69: #{tpu_custom_call.1} parent=27 // pred_check
          %p542 = pneg %p340
        $region70: #{tpu_custom_call.1} parent=27 // pred_check_branch
          %544 = sbr.rel (%p542) target = $region72
        $region71: #{tpu_custom_call.1} parent=27 // pred_region
          %p545 = scmp.lt.s32.totalorder %s30, 1
          %s546 = scalar_select %p545, %s30, 1
          %s547 = smul.addr %s546, 32
          %s548 = smul.addr %s547, 4
          %s549 = scalar_lea.vmem %s11, %s548
        $region72: #{tpu_custom_call.1} parent=27 // pred_fallthru
          _
        // Predicated region
        $region73: #{tpu_custom_call.1} parent=27 // pred_check
          %p550 = pneg %p366
        $region74: #{tpu_custom_call.1} parent=27 // pred_check_branch
          %552 = sbr.rel (%p550) target = $region76
        $region75: #{tpu_custom_call.1} parent=27 // pred_region
          %p553 = scmp.lt.s32.totalorder %s30, 1
          %s554 = scalar_select %p553, %s30, 1
          %s555 = scalar_lea.vmem %s12, %s554
        $region76: #{tpu_custom_call.1} parent=27 // pred_fallthru
          _
      $region28: #{tpu_custom_call.1} parent=5 // pred_fallthru
        _
      %p556 = scmp.le.s32.totalorder 1, %s22
      %p557 = scmp.lt.s32.totalorder %s22, 3
      %p558 = pnand %p556, %p557
      %p559 = pneg %p558
      // Predicated region
      $region77: #{tpu_custom_call.1} parent=5 // pred_check
        _
      $region78: #{tpu_custom_call.1} parent=5 // pred_check_branch
        %561 = sbr.rel (%p558) target = $region80
      $region79: #{tpu_custom_call.1} parent=5 // pred_region
        %s562 = ssub.s32 %s22, 1
        %s563 = smul.u32 2, %s31
        %p564 = scmp.lt.s32.totalorder %s563, 1
        %s565 = scalar_select %p564, %s563, 1
        %s566 = smul.addr %s565, 8
        %s567 = scalar_lea.vmem %s0, %s566
        %p568 = pneg %p60
        %p569 = pneg %p57
        %p570 = scmp.lt.s32.totalorder %s32, 1
        %s571 = scalar_select %p570, %s32, 1
        %s572 = scalar_lea.vmem %s1, %s571
        %p573 = pneg %p86
        %p574 = pneg %p83
        %p575 = scmp.lt.s32.totalorder %s32, 1
        %s576 = scalar_select %p575, %s32, 1
        %s577 = scalar_lea.vmem %s2, %s576
        %p578 = pneg %p112
        %p579 = pneg %p109
        %p580 = scmp.lt.s32.totalorder %s32, 1
        %s581 = scalar_select %p580, %s32, 1
        %s582 = smul.addr %s581, 16
        %s583 = smul.addr %s582, 4
        %s584 = scalar_lea.vmem %s3, %s583
        %p585 = pneg %p138
        %p586 = pneg %p135
        %p587 = scmp.lt.s32.totalorder %s32, 1
        %s588 = scalar_select %p587, %s32, 1
        %s589 = smul.addr %s588, 2
        %s590 = scalar_lea.vmem %s4, %s589
        %p591 = pneg %p164
        %p592 = pneg %p161
        %p593 = scmp.lt.s32.totalorder %s32, 1
        %s594 = scalar_select %p593, %s32, 1
        %s595 = smul.addr %s594, 8
        %s596 = smul.addr %s595, 4
        %s597 = scalar_lea.vmem %s5, %s596
        %p598 = pneg %p190
        %p599 = pneg %p187
        %p600 = scmp.lt.s32.totalorder %s32, 1
        %s601 = scalar_select %p600, %s32, 1
        %s602 = scalar_lea.vmem %s6, %s601
        %p603 = pneg %p216
        %p604 = pneg %p213
        %p605 = scmp.lt.s32.totalorder %s32, 1
        %s606 = scalar_select %p605, %s32, 1
        %s607 = scalar_lea.vmem %s7, %s606
        %p608 = pneg %p242
        %p609 = pneg %p239
        %p610 = scmp.lt.s32.totalorder %s32, 1
        %s611 = scalar_select %p610, %s32, 1
        %s612 = scalar_lea.vmem %s8, %s611
        %p613 = pneg %p268
        %p614 = pneg %p265
        %p615 = scmp.lt.s32.totalorder %s32, 1
        %s616 = scalar_select %p615, %s32, 1
        %s617 = smul.addr %s616, 16
        %s618 = smul.addr %s617, 4
        %s619 = scalar_lea.vmem %s9, %s618
        %p620 = pneg %p294
        %p621 = pneg %p291
        %p622 = scmp.lt.s32.totalorder %s32, 1
        %s623 = scalar_select %p622, %s32, 1
        %s624 = smul.addr %s623, 2
        %s625 = scalar_lea.vmem %s10, %s624
        %p626 = pneg %p320
        %p627 = pneg %p317
        %p628 = scmp.lt.s32.totalorder %s32, 1
        %s629 = scalar_select %p628, %s32, 1
        %s630 = smul.addr %s629, 32
        %s631 = smul.addr %s630, 4
        %s632 = scalar_lea.vmem %s11, %s631
        %p633 = pneg %p346
        %p634 = pneg %p343
        %p635 = scmp.lt.s32.totalorder %s32, 1
        %s636 = scalar_select %p635, %s32, 1
        %s637 = scalar_lea.vmem %s12, %s636
        %p638 = pneg %p372
        %p639 = pneg %p369
        %p640 = pneg %p393
        %p641 = pneg %p390
        %p642 = pneg %p414
        %p643 = pneg %p411
        %p644 = pneg %p440
        %p645 = pneg %p437
        %s646 = smul.u32 2, %s31
        %p647 = scmp.lt.s32.totalorder %s646, 1
        %s648 = scalar_select %p647, %s646, 1
        %s649 = smul.addr %s648, 8
        %s650 = scalar_lea.vmem %s0, %s649
        %s651 = smul.u32 2, %s31
        %p652 = scmp.lt.s32.totalorder %s32, 1
        %s653 = scalar_select %p652, %s32, 1
        %s654 = scalar_lea.vmem %s1, %s653
        %p655 = scmp.lt.s32.totalorder %s32, 1
        %s656 = scalar_select %p655, %s32, 1
        %s657 = scalar_lea.vmem %s2, %s656
        %p658 = scmp.lt.s32.totalorder %s32, 1
        %s659 = scalar_select %p658, %s32, 1
        %s660 = smul.addr %s659, 16
        %s661 = smul.addr %s660, 4
        %s662 = scalar_lea.vmem %s3, %s661
        %p663 = scmp.lt.s32.totalorder %s32, 1
        %s664 = scalar_select %p663, %s32, 1
        %s665 = smul.addr %s664, 2
        %s666 = scalar_lea.vmem %s4, %s665
        %p667 = scmp.lt.s32.totalorder %s32, 1
        %s668 = scalar_select %p667, %s32, 1
        %s669 = smul.addr %s668, 8
        %s670 = smul.addr %s669, 4
        %s671 = scalar_lea.vmem %s5, %s670
        %p672 = scmp.lt.s32.totalorder %s32, 1
        %s673 = scalar_select %p672, %s32, 1
        %s674 = scalar_lea.vmem %s6, %s673
        %p675 = scmp.lt.s32.totalorder %s32, 1
        %s676 = scalar_select %p675, %s32, 1
        %s677 = scalar_lea.vmem %s7, %s676
        %p678 = scmp.lt.s32.totalorder %s32, 1
        %s679 = scalar_select %p678, %s32, 1
        %s680 = scalar_lea.vmem %s8, %s679
        %p681 = scmp.lt.s32.totalorder %s32, 1
        %s682 = scalar_select %p681, %s32, 1
        %s683 = smul.addr %s682, 16
        %s684 = smul.addr %s683, 4
        %s685 = scalar_lea.vmem %s9, %s684
        %p686 = scmp.lt.s32.totalorder %s32, 1
        %s687 = scalar_select %p686, %s32, 1
        %s688 = smul.addr %s687, 2
        %s689 = scalar_lea.vmem %s10, %s688
        %p690 = scmp.lt.s32.totalorder %s32, 1
        %s691 = scalar_select %p690, %s32, 1
        %s692 = smul.addr %s691, 32
        %s693 = smul.addr %s692, 4
        %s694 = scalar_lea.vmem %s11, %s693
        %p695 = scmp.lt.s32.totalorder %s32, 1
        %s696 = scalar_select %p695, %s32, 1
        %s697 = scalar_lea.vmem %s12, %s696
        %s698 = smul.u32 2, %s31
        %p700 = scmp.eq.s32.totalorder %s32, 0
        // Predicated region
        $region81: #{tpu_custom_call.1} parent=79 // pred_check
          %p701 = pneg %p700
        $region82: #{tpu_custom_call.1} parent=79 // pred_check_branch
          %703 = sbr.rel (%p701) target = $region84
        $region83: #{tpu_custom_call.1} parent=79 // pred_region
          %v704 = vld [vmem:[%s650] sm:$0xff]
          %v705 = vld [vmem:[%s650 + $0x8] sm:$0xff]
          %vm706 = vcmask 523264
          %707 = vst.msk [vmem:[#allocation2] sm:$0xff] %vm706, %v704
          %708 = vst.msk [vmem:[#allocation2 + $0x8] sm:$0xff] %vm706, %v705
        $region84: #{tpu_custom_call.1} parent=79 // pred_fallthru
          _
        %v709 = vld [vmem:[#allocation2] sm:$0xff]
        %v710 = vld [vmem:[#allocation2 + $0x8] sm:$0xff]
        %v711 = vld [vmem:[%s654] sm:$0x1]
        %v712 = vld [vmem:[%s657] sm:$0x1]
        %vm713 = vcmask 523264
        %v714 = vsel %vm713, %v709, 0.0
        %715 = vadd.xlane.f32.xlu0 %v714
        %v716 = vpop.xlane.xlu0 %715
        %v717 = vsel %vm713, %v710, 0.0
        %718 = vadd.xlane.f32.xlu0 %v717
        %v719 = vpop.xlane.xlu0 %718
        %v720 = vrcp.pop 64.0
        %v721 = vmul.f32 %v716, %v720
        %v722 = vmul.f32 %v719, %v720
        %v723 = vsub.f32 %v709, %v721
        %v724 = vsub.f32 %v710, %v722
        %v725 = vmul.f32 %v723, %v723
        %v726 = vmul.f32 %v724, %v724
        %v727 = vsel %vm713, %v725, 0.0
        %728 = vadd.xlane.f32.xlu0 %v727
        %v729 = vpop.xlane.xlu0 %728
        %v730 = vsel %vm713, %v726, 0.0
        %731 = vadd.xlane.f32.xlu0 %v730
        %v732 = vpop.xlane.xlu0 %731
        %v733 = vmul.f32 %v729, %v720
        %v734 = vmul.f32 %v732, %v720
        %v735 = vadd.f32 %v733, 1e-05
        %v736 = vadd.f32 %v734, 1e-05
        %v737 = vrsqrt.pop %v735
        %v738 = vrsqrt.pop %v736
        %v739 = vmul.f32 %v723, %v737
        %v740 = vmul.f32 %v724, %v738
        %v742 = vlaneseq
        %v743 = vshrl.u32 %v742, 7
        %v744 = vsub.s32 0, %v743
        %v745 = vrot.slane %v711, %v744
        %v747 = vmul.f32 %v739, %v745
        %v748 = vmul.f32 %v740, %v745
        %v750 = vlaneseq
        %v751 = vshrl.u32 %v750, 7
        %v752 = vsub.s32 0, %v751
        %v753 = vrot.slane %v712, %v752
        %v755 = vadd.f32 %v747, %v753
        %v756 = vadd.f32 %v748, %v753
        %v757 = vpack.c.bf16 %v756, %v755
        %v758 = vld [vmem:[%s662] sm:$0xff]
        %v759 = vld [vmem:[%s662 + $0x8] sm:$0xff]
        %v760 = vld [vmem:[%s662 + $0x10] sm:$0xff]
        %v761 = vld [vmem:[%s662 + $0x18] sm:$0xff]
        %v762 = vld [vmem:[%s662 + $0x20] sm:$0xff]
        %v763 = vld [vmem:[%s662 + $0x28] sm:$0xff]
        %v764 = vld [vmem:[%s662 + $0x30] sm:$0xff]
        %v765 = vld [vmem:[%s662 + $0x38] sm:$0xff]
        %v766 = vld [vmem:[%s666] sm:$0x3]
        %v768 = vlaneseq
        %v769 = vshrl.u32 %v768, 7
        %v770 = vsub.s32 0, %v769
        %v771 = vrot.slane %v766, %v770
        %v772 = vlaneseq
        %v773 = vshrl.u32 %v772, 7
        %v774 = vsub.s32 1, %v773
        %v775 = vrot.slane %v766, %v774
        %v786 = vunpack.c.l.b16 %v758
        %v787 = vunpack.c.h.b16 %v758
        %v788 = vunpack.c.l.b16 %v759
        %v789 = vunpack.c.h.b16 %v759
        %v790 = vunpack.c.l.b16 %v760
        %v791 = vunpack.c.h.b16 %v760
        %v792 = vunpack.c.l.b16 %v761
        %v793 = vunpack.c.h.b16 %v761
        %v794 = vunpack.c.l.b16 %v762
        %v795 = vunpack.c.h.b16 %v762
        %v796 = vunpack.c.l.b16 %v763
        %v797 = vunpack.c.h.b16 %v763
        %v798 = vunpack.c.l.b16 %v764
        %v799 = vunpack.c.h.b16 %v764
        %v800 = vunpack.c.l.b16 %v765
        %v801 = vunpack.c.h.b16 %v765
        %v802 = vpack.c.b16 %v788, %v786
        %v803 = vpack.c.b16 %v789, %v787
        %v804 = vpack.c.b16 %v792, %v790
        %v805 = vpack.c.b16 %v793, %v791
        %v806 = vpack.c.b16 %v796, %v794
        %v807 = vpack.c.b16 %v797, %v795
        %v808 = vpack.c.b16 %v800, %v798
        %v809 = vpack.c.b16 %v801, %v799
        %v819 = vsel %vm713, %v757, 0
        %821 = vmatprep.subr.bf16.mxu0 %v803
        %822 = vmatpush1.bf16.msra.mxu0 %v802
        %823 = vmatprep.subr.bf16.mxu0 %v805
        %824 = vmatpush1.bf16.msra.mxu0 %v804
        %825 = vmatprep.subr.bf16.mxu0 %v807
        %826 = vmatpush1.bf16.msra.mxu0 %v806
        %827 = vmatprep.subr.bf16.mxu0 %v809
        %828 = vmatpush1.bf16.msra.mxu0 %v808
        %829 = vmatprep.subr.bf16.mxu0 0
        %830 = vmatpush1.bf16.msra.mxu0 0
        %831 = vmatprep.subr.bf16.mxu0 0
        %832 = vmatpush1.bf16.msra.mxu0 0
        %833 = vmatprep.subr.bf16.mxu0 0
        %834 = vmatpush1.bf16.msra.mxu0 0
        %835 = vmatprep.subr.bf16.mxu0 0
        %836 = vmatpush1.bf16.msra.mxu0 0
        %837 = vmatprep.subr.bf16.mxu0 0
        %838 = vmatpush1.bf16.msra.mxu0 0
        %839 = vmatprep.subr.bf16.mxu0 0
        %840 = vmatpush1.bf16.msra.mxu0 0
        %841 = vmatprep.subr.bf16.mxu0 0
        %842 = vmatpush1.bf16.msra.mxu0 0
        %843 = vmatprep.subr.bf16.mxu0 0
        %844 = vmatpush1.bf16.msra.mxu0 0
        %845 = vmatprep.subr.bf16.mxu0 0
        %846 = vmatpush1.bf16.msra.mxu0 0
        %847 = vmatprep.subr.bf16.mxu0 0
        %848 = vmatpush1.bf16.msra.mxu0 0
        %849 = vmatprep.subr.bf16.mxu0 0
        %850 = vmatpush1.bf16.msra.mxu0 0
        %851 = vmatprep.subr.bf16.mxu0 0
        %852 = vmatpush1.bf16.msra.mxu0 0
        %853 = vmatprep.mubr.bf16.mxu0 0
        %854 = vmatmul.mubr.bf16.gmra.mrb[0].mxu0 %v819
        %v855 = vpop.f32.mrb[0].mxu0
        %v856 = vadd.f32 %v771, %v855
        %v857 = vpop.f32.mrb[0].mxu0
        %v858 = vadd.f32 %v775, %v857
        %v859 = vpop.f32.mrb[0].mxu0
        %v860 = vadd.f32 %v771, %v859
        %v861 = vpop.f32.mrb[0].mxu0
        %v862 = vadd.f32 %v775, %v861
        %863 = vdwg.mxu0
        %v864 = vmul.f32 %v856, 0.25
        %v865 = vmul.f32 %v860, 0.25
        %v866 = vlaneseq
        %v867 = vshrl.u32 %v866, 7
        %v868 = vlaneseq
        %v869 = vand.u32 %v868, 127
        %vm870 = vcmp.gt.s32.totalorder %v869, %v867
        %v871 = vld [vmem:[%s671] sm:$0xf]
        %v872 = vld [vmem:[%s671 + $0x4] sm:$0xf]
        %v873 = vld [vmem:[%s671 + $0x8] sm:$0xf]
        %v874 = vld [vmem:[%s671 + $0xc] sm:$0xf]
        %v875 = vld [vmem:[%s671 + $0x10] sm:$0xf]
        %v876 = vld [vmem:[%s671 + $0x14] sm:$0xf]
        %v877 = vld [vmem:[%s671 + $0x18] sm:$0xf]
        %v878 = vld [vmem:[%s671 + $0x1c] sm:$0xf]
        %v879 = vpack.c.bf16 %v864, %v864
        %v880 = vpack.c.bf16 %v865, %v865
        %v881 = vpack.c.bf16 %v856, %v856
        %v882 = vpack.c.bf16 %v860, %v860
        %v883 = vpack.c.bf16 %v858, %v858
        %v884 = vpack.c.bf16 %v862, %v862
        %886 = vrot.lane.b32.xlu0 %v881, 64
        %v887 = vpop.permute.xlu0 %886
        %vm888 = vcmask 130048
        %v890 = vsel %vm888, %v879, 0
        %v893 = vsel %vm888, %v887, 0
        %895 = vmatprep.subr.bf16.mxu0 0
        %896 = vmatpush1.bf16.xpose.msra.mxu0 %v893
        %897 = vmatprep.subr.bf16.mxu0 0
        %898 = vmatpush1.bf16.xpose.msra.mxu0 0
        %899 = vmatprep.subr.bf16.mxu0 0
        %900 = vmatpush1.bf16.xpose.msra.mxu0 0
        %901 = vmatprep.subr.bf16.mxu0 0
        %902 = vmatpush1.bf16.xpose.msra.mxu0 0
        %903 = vmatprep.subr.bf16.mxu0 0
        %904 = vmatpush1.bf16.xpose.msra.mxu0 0
        %905 = vmatprep.subr.bf16.mxu0 0
        %906 = vmatpush1.bf16.xpose.msra.mxu0 0
        %907 = vmatprep.subr.bf16.mxu0 0
        %908 = vmatpush1.bf16.xpose.msra.mxu0 0
        %909 = vmatprep.subr.bf16.mxu0 0
        %910 = vmatpush1.bf16.xpose.msra.mxu0 0
        %911 = vmatprep.subr.bf16.mxu0 0
        %912 = vmatpush1.bf16.xpose.msra.mxu0 0
        %913 = vmatprep.subr.bf16.mxu0 0
        %914 = vmatpush1.bf16.xpose.msra.mxu0 0
        %915 = vmatprep.subr.bf16.mxu0 0
        %916 = vmatpush1.bf16.xpose.msra.mxu0 0
        %917 = vmatprep.subr.bf16.mxu0 0
        %918 = vmatpush1.bf16.xpose.msra.mxu0 0
        %919 = vmatprep.subr.bf16.mxu0 0
        %920 = vmatpush1.bf16.xpose.msra.mxu0 0
        %921 = vmatprep.subr.bf16.mxu0 0
        %922 = vmatpush1.bf16.xpose.msra.mxu0 0
        %923 = vmatprep.subr.bf16.mxu0 0
        %924 = vmatpush1.bf16.xpose.msra.mxu0 0
        %925 = vmatprep.subr.bf16.mxu0 0
        %926 = vmatpush1.bf16.xpose.msra.mxu0 0
        %927 = vmatprep.mubr.bf16.mxu0 0
        %928 = vmatmul.mubr.bf16.gmra.mrb[0].mxu0 %v890
        %v929 = vpop.f32.mrb[0].mxu0
        %v930 = vadd.f32 0.0, %v929
        %v931 = vpop.f32.mrb[0].mxu0
        %v932 = vpop.f32.mrb[0].mxu0
        %v933 = vpop.f32.mrb[0].mxu0
        %934 = vdwg.mxu0
        %936 = vrot.lane.b32.xlu0 %v882, 64
        %v937 = vpop.permute.xlu0 %936
        %v939 = vsel %vm888, %v880, 0
        %v942 = vsel %vm888, %v937, 0
        %944 = vmatprep.subr.bf16.mxu0 0
        %945 = vmatpush1.bf16.xpose.msra.mxu0 %v942
        %946 = vmatprep.subr.bf16.mxu0 0
        %947 = vmatpush1.bf16.xpose.msra.mxu0 0
        %948 = vmatprep.subr.bf16.mxu0 0
        %949 = vmatpush1.bf16.xpose.msra.mxu0 0
        %950 = vmatprep.subr.bf16.mxu0 0
        %951 = vmatpush1.bf16.xpose.msra.mxu0 0
        %952 = vmatprep.subr.bf16.mxu0 0
        %953 = vmatpush1.bf16.xpose.msra.mxu0 0
        %954 = vmatprep.subr.bf16.mxu0 0
        %955 = vmatpush1.bf16.xpose.msra.mxu0 0
        %956 = vmatprep.subr.bf16.mxu0 0
        %957 = vmatpush1.bf16.xpose.msra.mxu0 0
        %958 = vmatprep.subr.bf16.mxu0 0
        %959 = vmatpush1.bf16.xpose.msra.mxu0 0
        %960 = vmatprep.subr.bf16.mxu0 0
        %961 = vmatpush1.bf16.xpose.msra.mxu0 0
        %962 = vmatprep.subr.bf16.mxu0 0
        %963 = vmatpush1.bf16.xpose.msra.mxu0 0
        %964 = vmatprep.subr.bf16.mxu0 0
        %965 = vmatpush1.bf16.xpose.msra.mxu0 0
        %966 = vmatprep.subr.bf16.mxu0 0
        %967 = vmatpush1.bf16.xpose.msra.mxu0 0
        %968 = vmatprep.subr.bf16.mxu0 0
        %969 = vmatpush1.bf16.xpose.msra.mxu0 0
        %970 = vmatprep.subr.bf16.mxu0 0
        %971 = vmatpush1.bf16.xpose.msra.mxu0 0
        %972 = vmatprep.subr.bf16.mxu0 0
        %973 = vmatpush1.bf16.xpose.msra.mxu0 0
        %974 = vmatprep.subr.bf16.mxu0 0
        %975 = vmatpush1.bf16.xpose.msra.mxu0 0
        %976 = vmatprep.mubr.bf16.mxu0 0
        %977 = vmatmul.mubr.bf16.gmra.mrb[0].mxu0 %v939
        %v978 = vpop.f32.mrb[0].mxu0
        %v979 = vadd.f32 0.0, %v978
        %v980 = vpop.f32.mrb[0].mxu0
        %v981 = vpop.f32.mrb[0].mxu0
        %v982 = vpop.f32.mrb[0].mxu0
        %983 = vdwg.mxu0
        %v984 = vsel %vm870, 1, 0
        %vm985 = vcmp.eq.s32.totalorder %v984, 1
        %v986 = vsel %vm985, -inf, %v930
        %v987 = vsel %vm985, -inf, %v979
        %vm988 = vcmask 64512
        %v989 = vsel %vm988, %v986, -inf
        %990 = vmax.xlane.f32.xlu0 %v989
        %v991 = vpop.xlane.xlu0 %990
        %v992 = vsel %vm988, %v987, -inf
        %993 = vmax.xlane.f32.xlu0 %v992
        %v994 = vpop.xlane.xlu0 %993
        %v995 = vsub.f32 %v986, %v991
        %v996 = vsub.f32 %v987, %v994
        %v997 = vmul.f32 %v995, 1.442695
        %v998 = vpow.pop %v997
        %v999 = vmul.f32 %v996, 1.442695
        %v1000 = vpow.pop %v999
        %v1001 = vsel %vm988, %v998, 0.0
        %1002 = vadd.xlane.f32.xlu0 %v1001
        %v1003 = vpop.xlane.xlu0 %1002
        %v1004 = vsel %vm988, %v1000, 0.0
        %1005 = vadd.xlane.f32.xlu0 %v1004
        %v1006 = vpop.xlane.xlu0 %1005
        %v1007 = vrcp.pop %v1003
        %v1008 = vmul.f32 %v998, %v1007
        %v1009 = vrcp.pop %v1006
        %v1010 = vmul.f32 %v1000, %v1009
        %v1011 = vpack.c.bf16 %v1008, %v1008
        %v1012 = vpack.c.bf16 %v1010, %v1010
        %v1014 = vsel %vm988, %v1011, 0
        %vm1016 = vcmask 1043456
        %v1018 = vsel %vm1016, %v883, 0
        %1020 = vmatprep.subr.bf16.mxu0 0
        %1021 = vmatpush1.bf16.msra.mxu0 %v1018
        %1022 = vmatprep.subr.bf16.mxu0 0
        %1023 = vmatpush1.bf16.msra.mxu0 0
        %1024 = vmatprep.subr.bf16.mxu0 0
        %1025 = vmatpush1.bf16.msra.mxu0 0
        %1026 = vmatprep.subr.bf16.mxu0 0
        %1027 = vmatpush1.bf16.msra.mxu0 0
        %1028 = vmatprep.subr.bf16.mxu0 0
        %1029 = vmatpush1.bf16.msra.mxu0 0
        %1030 = vmatprep.subr.bf16.mxu0 0
        %1031 = vmatpush1.bf16.msra.mxu0 0
        %1032 = vmatprep.subr.bf16.mxu0 0
        %1033 = vmatpush1.bf16.msra.mxu0 0
        %1034 = vmatprep.subr.bf16.mxu0 0
        %1035 = vmatpush1.bf16.msra.mxu0 0
        %1036 = vmatprep.subr.bf16.mxu0 0
        %1037 = vmatpush1.bf16.msra.mxu0 0
        %1038 = vmatprep.subr.bf16.mxu0 0
        %1039 = vmatpush1.bf16.msra.mxu0 0
        %1040 = vmatprep.subr.bf16.mxu0 0
        %1041 = vmatpush1.bf16.msra.mxu0 0
        %1042 = vmatprep.subr.bf16.mxu0 0
        %1043 = vmatpush1.bf16.msra.mxu0 0
        %1044 = vmatprep.subr.bf16.mxu0 0
        %1045 = vmatpush1.bf16.msra.mxu0 0
        %1046 = vmatprep.subr.bf16.mxu0 0
        %1047 = vmatpush1.bf16.msra.mxu0 0
        %1048 = vmatprep.subr.bf16.mxu0 0
        %1049 = vmatpush1.bf16.msra.mxu0 0
        %1050 = vmatprep.subr.bf16.mxu0 0
        %1051 = vmatpush1.bf16.msra.mxu0 0
        %1052 = vmatprep.mubr.bf16.mxu0 0
        %1053 = vmatmul.mubr.bf16.gmra.mrb[0].mxu0 %v1014
        %v1054 = vpop.f32.mrb[0].mxu0
        %v1055 = vadd.f32 0.0, %v1054
        %v1056 = vpop.f32.mrb[0].mxu0
        %v1057 = vpop.f32.mrb[0].mxu0
        %v1058 = vpop.f32.mrb[0].mxu0
        %1059 = vdwg.mxu0
        %v1061 = vsel %vm988, %v1012, 0
        %v1064 = vsel %vm1016, %v884, 0
        %1066 = vmatprep.subr.bf16.mxu0 0
        %1067 = vmatpush1.bf16.msra.mxu0 %v1064
        %1068 = vmatprep.subr.bf16.mxu0 0
        %1069 = vmatpush1.bf16.msra.mxu0 0
        %1070 = vmatprep.subr.bf16.mxu0 0
        %1071 = vmatpush1.bf16.msra.mxu0 0
        %1072 = vmatprep.subr.bf16.mxu0 0
        %1073 = vmatpush1.bf16.msra.mxu0 0
        %1074 = vmatprep.subr.bf16.mxu0 0
        %1075 = vmatpush1.bf16.msra.mxu0 0
        %1076 = vmatprep.subr.bf16.mxu0 0
        %1077 = vmatpush1.bf16.msra.mxu0 0
        %1078 = vmatprep.subr.bf16.mxu0 0
        %1079 = vmatpush1.bf16.msra.mxu0 0
        %1080 = vmatprep.subr.bf16.mxu0 0
        %1081 = vmatpush1.bf16.msra.mxu0 0
        %1082 = vmatprep.subr.bf16.mxu0 0
        %1083 = vmatpush1.bf16.msra.mxu0 0
        %1084 = vmatprep.subr.bf16.mxu0 0
        %1085 = vmatpush1.bf16.msra.mxu0 0
        %1086 = vmatprep.subr.bf16.mxu0 0
        %1087 = vmatpush1.bf16.msra.mxu0 0
        %1088 = vmatprep.subr.bf16.mxu0 0
        %1089 = vmatpush1.bf16.msra.mxu0 0
        %1090 = vmatprep.subr.bf16.mxu0 0
        %1091 = vmatpush1.bf16.msra.mxu0 0
        %1092 = vmatprep.subr.bf16.mxu0 0
        %1093 = vmatpush1.bf16.msra.mxu0 0
        %1094 = vmatprep.subr.bf16.mxu0 0
        %1095 = vmatpush1.bf16.msra.mxu0 0
        %1096 = vmatprep.subr.bf16.mxu0 0
        %1097 = vmatpush1.bf16.msra.mxu0 0
        %1098 = vmatprep.mubr.bf16.mxu0 0
        %1099 = vmatmul.mubr.bf16.gmra.mrb[0].mxu0 %v1061
        %v1100 = vpop.f32.mrb[0].mxu0
        %v1101 = vadd.f32 0.0, %v1100
        %v1102 = vpop.f32.mrb[0].mxu0
        %v1103 = vpop.f32.mrb[0].mxu0
        %v1104 = vpop.f32.mrb[0].mxu0
        %1105 = vdwg.mxu0
        %v1106 = vpack.c.bf16 %v1101, %v1055
        %1108 = vrot.lane.b32.xlu0 %v879, 112
        %v1109 = vpop.permute.xlu0 %1108
        %1110 = vrot.lane.b32.xlu0 %v881, 48
        %v1111 = vpop.permute.xlu0 %1110
        %v1113 = vsel %vm888, %v1109, 0
        %v1116 = vsel %vm888, %v1111, 0
        %1118 = vmatprep.subr.bf16.mxu0 0
        %1119 = vmatpush1.bf16.xpose.msra.mxu0 %v1116
        %1120 = vmatprep.subr.bf16.mxu0 0
        %1121 = vmatpush1.bf16.xpose.msra.mxu0 0
        %1122 = vmatprep.subr.bf16.mxu0 0
        %1123 = vmatpush1.bf16.xpose.msra.mxu0 0
        %1124 = vmatprep.subr.bf16.mxu0 0
        %1125 = vmatpush1.bf16.xpose.msra.mxu0 0
        %1126 = vmatprep.subr.bf16.mxu0 0
        %1127 = vmatpush1.bf16.xpose.msra.mxu0 0
        %1128 = vmatprep.subr.bf16.mxu0 0
        %1129 = vmatpush1.bf16.xpose.msra.mxu0 0
        %1130 = vmatprep.subr.bf16.mxu0 0
        %1131 = vmatpush1.bf16.xpose.msra.mxu0 0
        %1132 = vmatprep.subr.bf16.mxu0 0
        %1133 = vmatpush1.bf16.xpose.msra.mxu0 0
        %1134 = vmatprep.subr.bf16.mxu0 0
        %1135 = vmatpush1.bf16.xpose.msra.mxu0 0
        %1136 = vmatprep.subr.bf16.mxu0 0
        %1137 = vmatpush1.bf16.xpose.msra.mxu0 0
        %1138 = vmatprep.subr.bf16.mxu0 0
        %1139 = vmatpush1.bf16.xpose.msra.mxu0 0
        %1140 = vmatprep.subr.bf16.mxu0 0
        %1141 = vmatpush1.bf16.xpose.msra.mxu0 0
        %1142 = vmatprep.subr.bf16.mxu0 0
        %1143 = vmatpush1.bf16.xpose.msra.mxu0 0
        %1144 = vmatprep.subr.bf16.mxu0 0
        %1145 = vmatpush1.bf16.xpose.msra.mxu0 0
        %1146 = vmatprep.subr.bf16.mxu0 0
        %1147 = vmatpush1.bf16.xpose.msra.mxu0 0
        %1148 = vmatprep.subr.bf16.mxu0 0
        %1149 = vmatpush1.bf16.xpose.msra.mxu0 0
        %1150 = vmatprep.mubr.bf16.mxu0 0
        %1151 = vmatmul.mubr.bf16.gmra.mrb[0].mxu0 %v1113
        %v1152 = vpop.f32.mrb[0].mxu0
        %v1153 = vadd.f32 0.0, %v1152
        %v1154 = vpop.f32.mrb[0].mxu0
        %v1155 = vpop.f32.mrb[0].mxu0
        %v1156 = vpop.f32.mrb[0].mxu0
        %1157 = vdwg.mxu0
        %1159 = vrot.lane.b32.xlu0 %v880, 112
        %v1160 = vpop.permute.xlu0 %1159
        %1161 = vrot.lane.b32.xlu0 %v882, 48
        %v1162 = vpop.permute.xlu0 %1161
        %v1164 = vsel %vm888, %v1160, 0
        %v1167 = vsel %vm888, %v1162, 0
        %1169 = vmatprep.subr.bf16.mxu0 0
        %1170 = vmatpush1.bf16.xpose.msra.mxu0 %v1167
        %1171 = vmatprep.subr.bf16.mxu0 0
        %1172 = vmatpush1.bf16.xpose.msra.mxu0 0
        %1173 = vmatprep.subr.bf16.mxu0 0
        %1174 = vmatpush1.bf16.xpose.msra.mxu0 0
        %1175 = vmatprep.subr.bf16.mxu0 0
        %1176 = vmatpush1.bf16.xpose.msra.mxu0 0
        %1177 = vmatprep.subr.bf16.mxu0 0
        %1178 = vmatpush1.bf16.xpose.msra.mxu0 0
        %1179 = vmatprep.subr.bf16.mxu0 0
        %1180 = vmatpush1.bf16.xpose.msra.mxu0 0
        %1181 = vmatprep.subr.bf16.mxu0 0
        %1182 = vmatpush1.bf16.xpose.msra.mxu0 0
        %1183 = vmatprep.subr.bf16.mxu0 0
        %1184 = vmatpush1.bf16.xpose.msra.mxu0 0
        %1185 = vmatprep.subr.bf16.mxu0 0
        %1186 = vmatpush1.bf16.xpose.msra.mxu0 0
        %1187 = vmatprep.subr.bf16.mxu0 0
        %1188 = vmatpush1.bf16.xpose.msra.mxu0 0
        %1189 = vmatprep.subr.bf16.mxu0 0
        %1190 = vmatpush1.bf16.xpose.msra.mxu0 0
        %1191 = vmatprep.subr.bf16.mxu0 0
        %1192 = vmatpush1.bf16.xpose.msra.mxu0 0
        %1193 = vmatprep.subr.bf16.mxu0 0
        %1194 = vmatpush1.bf16.xpose.msra.mxu0 0
        %1195 = vmatprep.subr.bf16.mxu0 0
        %1196 = vmatpush1.bf16.xpose.msra.mxu0 0
        %1197 = vmatprep.subr.bf16.mxu0 0
        %1198 = vmatpush1.bf16.xpose.msra.mxu0 0
        %1199 = vmatprep.subr.bf16.mxu0 0
        %1200 = vmatpush1.bf16.xpose.msra.mxu0 0
        %1201 = vmatprep.mubr.bf16.mxu0 0
        %1202 = vmatmul.mubr.bf16.gmra.mrb[0].mxu0 %v1164
        %v1203 = vpop.f32.mrb[0].mxu0
        %v1204 = vadd.f32 0.0, %v1203
        %v1205 = vpop.f32.mrb[0].mxu0
        %v1206 = vpop.f32.mrb[0].mxu0
        %v1207 = vpop.f32.mrb[0].mxu0
        %1208 = vdwg.mxu0
        %v1209 = vsel %vm985, -inf, %v1153
        %v1210 = vsel %vm985, -inf, %v1204
        %v1211 = vsel %vm988, %v1209, -inf
        %1212 = vmax.xlane.f32.xlu0 %v1211
        %v1213 = vpop.xlane.xlu0 %1212
        %v1214 = vsel %vm988, %v1210, -inf
        %1215 = vmax.xlane.f32.xlu0 %v1214
        %v1216 = vpop.xlane.xlu0 %1215
        %v1217 = vsub.f32 %v1209, %v1213
        %v1218 = vsub.f32 %v1210, %v1216
        %v1219 = vmul.f32 %v1217, 1.442695
        %v1220 = vpow.pop %v1219
        %v1221 = vmul.f32 %v1218, 1.442695
        %v1222 = vpow.pop %v1221
        %v1223 = vsel %vm988, %v1220, 0.0
        %1224 = vadd.xlane.f32.xlu0 %v1223
        %v1225 = vpop.xlane.xlu0 %1224
        %v1226 = vsel %vm988, %v1222, 0.0
        %1227 = vadd.xlane.f32.xlu0 %v1226
        %v1228 = vpop.xlane.xlu0 %1227
        %v1229 = vrcp.pop %v1225
        %v1230 = vmul.f32 %v1220, %v1229
        %v1231 = vrcp.pop %v1228
        %v1232 = vmul.f32 %v1222, %v1231
        %v1233 = vpack.c.bf16 %v1230, %v1230
        %v1234 = vpack.c.bf16 %v1232, %v1232
        %1236 = vrot.lane.b32.xlu0 %v883, 112
        %v1237 = vpop.permute.xlu0 %1236
        %v1239 = vsel %vm988, %v1233, 0
        %v1242 = vsel %vm1016, %v1237, 0
        %1244 = vmatprep.subr.bf16.mxu0 0
        %1245 = vmatpush1.bf16.msra.mxu0 %v1242
        %1246 = vmatprep.subr.bf16.mxu0 0
        %1247 = vmatpush1.bf16.msra.mxu0 0
        %1248 = vmatprep.subr.bf16.mxu0 0
        %1249 = vmatpush1.bf16.msra.mxu0 0
        %1250 = vmatprep.subr.bf16.mxu0 0
        %1251 = vmatpush1.bf16.msra.mxu0 0
        %1252 = vmatprep.subr.bf16.mxu0 0
        %1253 = vmatpush1.bf16.msra.mxu0 0
        %1254 = vmatprep.subr.bf16.mxu0 0
        %1255 = vmatpush1.bf16.msra.mxu0 0
        %1256 = vmatprep.subr.bf16.mxu0 0
        %1257 = vmatpush1.bf16.msra.mxu0 0
        %1258 = vmatprep.subr.bf16.mxu0 0
        %1259 = vmatpush1.bf16.msra.mxu0 0
        %1260 = vmatprep.subr.bf16.mxu0 0
        %1261 = vmatpush1.bf16.msra.mxu0 0
        %1262 = vmatprep.subr.bf16.mxu0 0
        %1263 = vmatpush1.bf16.msra.mxu0 0
        %1264 = vmatprep.subr.bf16.mxu0 0
        %1265 = vmatpush1.bf16.msra.mxu0 0
        %1266 = vmatprep.subr.bf16.mxu0 0
        %1267 = vmatpush1.bf16.msra.mxu0 0
        %1268 = vmatprep.subr.bf16.mxu0 0
        %1269 = vmatpush1.bf16.msra.mxu0 0
        %1270 = vmatprep.subr.bf16.mxu0 0
        %1271 = vmatpush1.bf16.msra.mxu0 0
        %1272 = vmatprep.subr.bf16.mxu0 0
        %1273 = vmatpush1.bf16.msra.mxu0 0
        %1274 = vmatprep.subr.bf16.mxu0 0
        %1275 = vmatpush1.bf16.msra.mxu0 0
        %1276 = vmatprep.mubr.bf16.mxu0 0
        %1277 = vmatmul.mubr.bf16.gmra.mrb[0].mxu0 %v1239
        %v1278 = vpop.f32.mrb[0].mxu0
        %v1279 = vadd.f32 0.0, %v1278
        %v1280 = vpop.f32.mrb[0].mxu0
        %v1281 = vpop.f32.mrb[0].mxu0
        %v1282 = vpop.f32.mrb[0].mxu0
        %1283 = vdwg.mxu0
        %1285 = vrot.lane.b32.xlu0 %v884, 112
        %v1286 = vpop.permute.xlu0 %1285
        %v1288 = vsel %vm988, %v1234, 0
        %v1291 = vsel %vm1016, %v1286, 0
        %1293 = vmatprep.subr.bf16.mxu0 0
        %1294 = vmatpush1.bf16.msra.mxu0 %v1291
        %1295 = vmatprep.subr.bf16.mxu0 0
        %1296 = vmatpush1.bf16.msra.mxu0 0
        %1297 = vmatprep.subr.bf16.mxu0 0
        %1298 = vmatpush1.bf16.msra.mxu0 0
        %1299 = vmatprep.subr.bf16.mxu0 0
        %1300 = vmatpush1.bf16.msra.mxu0 0
        %1301 = vmatprep.subr.bf16.mxu0 0
        %1302 = vmatpush1.bf16.msra.mxu0 0
        %1303 = vmatprep.subr.bf16.mxu0 0
        %1304 = vmatpush1.bf16.msra.mxu0 0
        %1305 = vmatprep.subr.bf16.mxu0 0
        %1306 = vmatpush1.bf16.msra.mxu0 0
        %1307 = vmatprep.subr.bf16.mxu0 0
        %1308 = vmatpush1.bf16.msra.mxu0 0
        %1309 = vmatprep.subr.bf16.mxu0 0
        %1310 = vmatpush1.bf16.msra.mxu0 0
        %1311 = vmatprep.subr.bf16.mxu0 0
        %1312 = vmatpush1.bf16.msra.mxu0 0
        %1313 = vmatprep.subr.bf16.mxu0 0
        %1314 = vmatpush1.bf16.msra.mxu0 0
        %1315 = vmatprep.subr.bf16.mxu0 0
        %1316 = vmatpush1.bf16.msra.mxu0 0
        %1317 = vmatprep.subr.bf16.mxu0 0
        %1318 = vmatpush1.bf16.msra.mxu0 0
        %1319 = vmatprep.subr.bf16.mxu0 0
        %1320 = vmatpush1.bf16.msra.mxu0 0
        %1321 = vmatprep.subr.bf16.mxu0 0
        %1322 = vmatpush1.bf16.msra.mxu0 0
        %1323 = vmatprep.subr.bf16.mxu0 0
        %1324 = vmatpush1.bf16.msra.mxu0 0
        %1325 = vmatprep.mubr.bf16.mxu0 0
        %1326 = vmatmul.mubr.bf16.gmra.mrb[0].mxu0 %v1288
        %v1327 = vpop.f32.mrb[0].mxu0
        %v1328 = vadd.f32 0.0, %v1327
        %v1329 = vpop.f32.mrb[0].mxu0
        %v1330 = vpop.f32.mrb[0].mxu0
        %v1331 = vpop.f32.mrb[0].mxu0
        %1332 = vdwg.mxu0
        %v1333 = vpack.c.bf16 %v1328, %v1279
        %v1336 = vunpack.c.l.b16 %v873
        %v1337 = vunpack.c.l.b16 %v874
        %v1338 = vpack.c.b16 %v1337, %v1336
        %v1341 = vsel %vm888, %v1333, 0
        %1343 = vmatprep.subr.bf16.mxu0 0
        %1344 = vmatpush1.bf16.msra.mxu0 %v1338
        %1345 = vmatprep.subr.bf16.mxu0 0
        %1346 = vmatpush1.bf16.msra.mxu0 0
        %1347 = vmatprep.subr.bf16.mxu0 0
        %1348 = vmatpush1.bf16.msra.mxu0 0
        %1349 = vmatprep.subr.bf16.mxu0 0
        %1350 = vmatpush1.bf16.msra.mxu0 0
        %1351 = vmatprep.subr.bf16.mxu0 0
        %1352 = vmatpush1.bf16.msra.mxu0 0
        %1353 = vmatprep.subr.bf16.mxu0 0
        %1354 = vmatpush1.bf16.msra.mxu0 0
        %1355 = vmatprep.subr.bf16.mxu0 0
        %1356 = vmatpush1.bf16.msra.mxu0 0
        %1357 = vmatprep.subr.bf16.mxu0 0
        %1358 = vmatpush1.bf16.msra.mxu0 0
        %1359 = vmatprep.subr.bf16.mxu0 0
        %1360 = vmatpush1.bf16.msra.mxu0 0
        %1361 = vmatprep.subr.bf16.mxu0 0
        %1362 = vmatpush1.bf16.msra.mxu0 0
        %1363 = vmatprep.subr.bf16.mxu0 0
        %1364 = vmatpush1.bf16.msra.mxu0 0
        %1365 = vmatprep.subr.bf16.mxu0 0
        %1366 = vmatpush1.bf16.msra.mxu0 0
        %1367 = vmatprep.subr.bf16.mxu0 0
        %1368 = vmatpush1.bf16.msra.mxu0 0
        %1369 = vmatprep.subr.bf16.mxu0 0
        %1370 = vmatpush1.bf16.msra.mxu0 0
        %1371 = vmatprep.subr.bf16.mxu0 0
        %1372 = vmatpush1.bf16.msra.mxu0 0
        %1373 = vmatprep.subr.bf16.mxu0 0
        %1374 = vmatpush1.bf16.msra.mxu0 0
        %1375 = vmatprep.mubr.bf16.mxu0 0
        %1376 = vmatmul.mubr.bf16.gmra.mrb[0].mxu0 %v1341
        %v1377 = vpop.f32.mrb[0].mxu0
        %v1378 = vadd.f32 0.0, %v1377
        %v1379 = vpop.f32.mrb[0].mxu0
        %v1380 = vpop.f32.mrb[0].mxu0
        %v1381 = vadd.f32 0.0, %v1380
        %v1382 = vpop.f32.mrb[0].mxu0
        %1383 = vdwg.mxu0
        %v1386 = vunpack.c.l.b16 %v871
        %v1387 = vunpack.c.l.b16 %v872
        %v1388 = vpack.c.b16 %v1387, %v1386
        %v1391 = vsel %vm888, %v1106, 0
        %1393 = vmatprep.subr.bf16.mxu0 0
        %1394 = vmatpush1.bf16.msra.mxu0 %v1388
        %1395 = vmatprep.subr.bf16.mxu0 0
        %1396 = vmatpush1.bf16.msra.mxu0 0
        %1397 = vmatprep.subr.bf16.mxu0 0
        %1398 = vmatpush1.bf16.msra.mxu0 0
        %1399 = vmatprep.subr.bf16.mxu0 0
        %1400 = vmatpush1.bf16.msra.mxu0 0
        %1401 = vmatprep.subr.bf16.mxu0 0
        %1402 = vmatpush1.bf16.msra.mxu0 0
        %1403 = vmatprep.subr.bf16.mxu0 0
        %1404 = vmatpush1.bf16.msra.mxu0 0
        %1405 = vmatprep.subr.bf16.mxu0 0
        %1406 = vmatpush1.bf16.msra.mxu0 0
        %1407 = vmatprep.subr.bf16.mxu0 0
        %1408 = vmatpush1.bf16.msra.mxu0 0
        %1409 = vmatprep.subr.bf16.mxu0 0
        %1410 = vmatpush1.bf16.msra.mxu0 0
        %1411 = vmatprep.subr.bf16.mxu0 0
        %1412 = vmatpush1.bf16.msra.mxu0 0
        %1413 = vmatprep.subr.bf16.mxu0 0
        %1414 = vmatpush1.bf16.msra.mxu0 0
        %1415 = vmatprep.subr.bf16.mxu0 0
        %1416 = vmatpush1.bf16.msra.mxu0 0
        %1417 = vmatprep.subr.bf16.mxu0 0
        %1418 = vmatpush1.bf16.msra.mxu0 0
        %1419 = vmatprep.subr.bf16.mxu0 0
        %1420 = vmatpush1.bf16.msra.mxu0 0
        %1421 = vmatprep.subr.bf16.mxu0 0
        %1422 = vmatpush1.bf16.msra.mxu0 0
        %1423 = vmatprep.subr.bf16.mxu0 0
        %1424 = vmatpush1.bf16.msra.mxu0 0
        %1425 = vmatprep.mubr.bf16.mxu0 0
        %1426 = vmatmul.mubr.bf16.gmra.mrb[0].mxu0 %v1391
        %v1427 = vpop.f32.mrb[0].mxu0
        %v1428 = vadd.f32 %v1378, %v1427
        %v1429 = vpop.f32.mrb[0].mxu0
        %v1430 = vpop.f32.mrb[0].mxu0
        %v1431 = vadd.f32 %v1381, %v1430
        %v1432 = vpop.f32.mrb[0].mxu0
        %1433 = vdwg.mxu0
        %1434 = vrot.lane.b32.xlu0 %v879, 96
        %v1435 = vpop.permute.xlu0 %1434
        %1436 = vrot.lane.b32.xlu0 %v881, 32
        %v1437 = vpop.permute.xlu0 %1436
        %v1439 = vsel %vm888, %v1435, 0
        %v1442 = vsel %vm888, %v1437, 0
        %1444 = vmatprep.subr.bf16.mxu0 0
        %1445 = vmatpush1.bf16.xpose.msra.mxu0 %v1442
        %1446 = vmatprep.subr.bf16.mxu0 0
        %1447 = vmatpush1.bf16.xpose.msra.mxu0 0
        %1448 = vmatprep.subr.bf16.mxu0 0
        %1449 = vmatpush1.bf16.xpose.msra.mxu0 0
        %1450 = vmatprep.subr.bf16.mxu0 0
        %1451 = vmatpush1.bf16.xpose.msra.mxu0 0
        %1452 = vmatprep.subr.bf16.mxu0 0
        %1453 = vmatpush1.bf16.xpose.msra.mxu0 0
        %1454 = vmatprep.subr.bf16.mxu0 0
        %1455 = vmatpush1.bf16.xpose.msra.mxu0 0
        %1456 = vmatprep.subr.bf16.mxu0 0
        %1457 = vmatpush1.bf16.xpose.msra.mxu0 0
        %1458 = vmatprep.subr.bf16.mxu0 0
        %1459 = vmatpush1.bf16.xpose.msra.mxu0 0
        %1460 = vmatprep.subr.bf16.mxu0 0
        %1461 = vmatpush1.bf16.xpose.msra.mxu0 0
        %1462 = vmatprep.subr.bf16.mxu0 0
        %1463 = vmatpush1.bf16.xpose.msra.mxu0 0
        %1464 = vmatprep.subr.bf16.mxu0 0
        %1465 = vmatpush1.bf16.xpose.msra.mxu0 0
        %1466 = vmatprep.subr.bf16.mxu0 0
        %1467 = vmatpush1.bf16.xpose.msra.mxu0 0
        %1468 = vmatprep.subr.bf16.mxu0 0
        %1469 = vmatpush1.bf16.xpose.msra.mxu0 0
        %1470 = vmatprep.subr.bf16.mxu0 0
        %1471 = vmatpush1.bf16.xpose.msra.mxu0 0
        %1472 = vmatprep.subr.bf16.mxu0 0
        %1473 = vmatpush1.bf16.xpose.msra.mxu0 0
        %1474 = vmatprep.subr.bf16.mxu0 0
        %1475 = vmatpush1.bf16.xpose.msra.mxu0 0
        %1476 = vmatprep.mubr.bf16.mxu0 0
        %1477 = vmatmul.mubr.bf16.gmra.mrb[0].mxu0 %v1439
        %v1478 = vpop.f32.mrb[0].mxu0
        %v1479 = vadd.f32 0.0, %v1478
        %v1480 = vpop.f32.mrb[0].mxu0
        %v1481 = vpop.f32.mrb[0].mxu0
        %v1482 = vpop.f32.mrb[0].mxu0
        %1483 = vdwg.mxu0
        %1484 = vrot.lane.b32.xlu0 %v880, 96
        %v1485 = vpop.permute.xlu0 %1484
        %1486 = vrot.lane.b32.xlu0 %v882, 32
        %v1487 = vpop.permute.xlu0 %1486
        %v1489 = vsel %vm888, %v1485, 0
        %v1492 = vsel %vm888, %v1487, 0
        %1494 = vmatprep.subr.bf16.mxu0 0
        %1495 = vmatpush1.bf16.xpose.msra.mxu0 %v1492
        %1496 = vmatprep.subr.bf16.mxu0 0
        %1497 = vmatpush1.bf16.xpose.msra.mxu0 0
        %1498 = vmatprep.subr.bf16.mxu0 0
        %1499 = vmatpush1.bf16.xpose.msra.mxu0 0
        %1500 = vmatprep.subr.bf16.mxu0 0
        %1501 = vmatpush1.bf16.xpose.msra.mxu0 0
        %1502 = vmatprep.subr.bf16.mxu0 0
        %1503 = vmatpush1.bf16.xpose.msra.mxu0 0
        %1504 = vmatprep.subr.bf16.mxu0 0
        %1505 = vmatpush1.bf16.xpose.msra.mxu0 0
        %1506 = vmatprep.subr.bf16.mxu0 0
        %1507 = vmatpush1.bf16.xpose.msra.mxu0 0
        %1508 = vmatprep.subr.bf16.mxu0 0
        %1509 = vmatpush1.bf16.xpose.msra.mxu0 0
        %1510 = vmatprep.subr.bf16.mxu0 0
        %1511 = vmatpush1.bf16.xpose.msra.mxu0 0
        %1512 = vmatprep.subr.bf16.mxu0 0
        %1513 = vmatpush1.bf16.xpose.msra.mxu0 0
        %1514 = vmatprep.subr.bf16.mxu0 0
        %1515 = vmatpush1.bf16.xpose.msra.mxu0 0
        %1516 = vmatprep.subr.bf16.mxu0 0
        %1517 = vmatpush1.bf16.xpose.msra.mxu0 0
        %1518 = vmatprep.subr.bf16.mxu0 0
        %1519 = vmatpush1.bf16.xpose.msra.mxu0 0
        %1520 = vmatprep.subr.bf16.mxu0 0
        %1521 = vmatpush1.bf16.xpose.msra.mxu0 0
        %1522 = vmatprep.subr.bf16.mxu0 0
        %1523 = vmatpush1.bf16.xpose.msra.mxu0 0
        %1524 = vmatprep.subr.bf16.mxu0 0
        %1525 = vmatpush1.bf16.xpose.msra.mxu0 0
        %1526 = vmatprep.mubr.bf16.mxu0 0
        %1527 = vmatmul.mubr.bf16.gmra.mrb[0].mxu0 %v1489
        %v1528 = vpop.f32.mrb[0].mxu0
        %v1529 = vadd.f32 0.0, %v1528
        %v1530 = vpop.f32.mrb[0].mxu0
        %v1531 = vpop.f32.mrb[0].mxu0
        %v1532 = vpop.f32.mrb[0].mxu0
        %1533 = vdwg.mxu0
        %v1534 = vsel %vm985, -inf, %v1479
        %v1535 = vsel %vm985, -inf, %v1529
        %v1536 = vsel %vm988, %v1534, -inf
        %1537 = vmax.xlane.f32.xlu0 %v1536
        %v1538 = vpop.xlane.xlu0 %1537
        %v1539 = vsel %vm988, %v1535, -inf
        %1540 = vmax.xlane.f32.xlu0 %v1539
        %v1541 = vpop.xlane.xlu0 %1540
        %v1542 = vsub.f32 %v1534, %v1538
        %v1543 = vsub.f32 %v1535, %v1541
        %v1544 = vmul.f32 %v1542, 1.442695
        %v1545 = vpow.pop %v1544
        %v1546 = vmul.f32 %v1543, 1.442695
        %v1547 = vpow.pop %v1546
        %v1548 = vsel %vm988, %v1545, 0.0
        %1549 = vadd.xlane.f32.xlu0 %v1548
        %v1550 = vpop.xlane.xlu0 %1549
        %v1551 = vsel %vm988, %v1547, 0.0
        %1552 = vadd.xlane.f32.xlu0 %v1551
        %v1553 = vpop.xlane.xlu0 %1552
        %v1554 = vrcp.pop %v1550
        %v1555 = vmul.f32 %v1545, %v1554
        %v1556 = vrcp.pop %v1553
        %v1557 = vmul.f32 %v1547, %v1556
        %v1558 = vpack.c.bf16 %v1555, %v1555
        %v1559 = vpack.c.bf16 %v1557, %v1557
        %1560 = vrot.lane.b32.xlu0 %v883, 96
        %v1561 = vpop.permute.xlu0 %1560
        %v1563 = vsel %vm988, %v1558, 0
        %v1566 = vsel %vm1016, %v1561, 0
        %1568 = vmatprep.subr.bf16.mxu0 0
        %1569 = vmatpush1.bf16.msra.mxu0 %v1566
        %1570 = vmatprep.subr.bf16.mxu0 0
        %1571 = vmatpush1.bf16.msra.mxu0 0
        %1572 = vmatprep.subr.bf16.mxu0 0
        %1573 = vmatpush1.bf16.msra.mxu0 0
        %1574 = vmatprep.subr.bf16.mxu0 0
        %1575 = vmatpush1.bf16.msra.mxu0 0
        %1576 = vmatprep.subr.bf16.mxu0 0
        %1577 = vmatpush1.bf16.msra.mxu0 0
        %1578 = vmatprep.subr.bf16.mxu0 0
        %1579 = vmatpush1.bf16.msra.mxu0 0
        %1580 = vmatprep.subr.bf16.mxu0 0
        %1581 = vmatpush1.bf16.msra.mxu0 0
        %1582 = vmatprep.subr.bf16.mxu0 0
        %1583 = vmatpush1.bf16.msra.mxu0 0
        %1584 = vmatprep.subr.bf16.mxu0 0
        %1585 = vmatpush1.bf16.msra.mxu0 0
        %1586 = vmatprep.subr.bf16.mxu0 0
        %1587 = vmatpush1.bf16.msra.mxu0 0
        %1588 = vmatprep.subr.bf16.mxu0 0
        %1589 = vmatpush1.bf16.msra.mxu0 0
        %1590 = vmatprep.subr.bf16.mxu0 0
        %1591 = vmatpush1.bf16.msra.mxu0 0
        %1592 = vmatprep.subr.bf16.mxu0 0
        %1593 = vmatpush1.bf16.msra.mxu0 0
        %1594 = vmatprep.subr.bf16.mxu0 0
        %1595 = vmatpush1.bf16.msra.mxu0 0
        %1596 = vmatprep.subr.bf16.mxu0 0
        %1597 = vmatpush1.bf16.msra.mxu0 0
        %1598 = vmatprep.subr.bf16.mxu0 0
        %1599 = vmatpush1.bf16.msra.mxu0 0
        %1600 = vmatprep.mubr.bf16.mxu0 0
        %1601 = vmatmul.mubr.bf16.gmra.mrb[0].mxu0 %v1563
        %v1602 = vpop.f32.mrb[0].mxu0
        %v1603 = vadd.f32 0.0, %v1602
        %v1604 = vpop.f32.mrb[0].mxu0
        %v1605 = vpop.f32.mrb[0].mxu0
        %v1606 = vpop.f32.mrb[0].mxu0
        %1607 = vdwg.mxu0
        %1608 = vrot.lane.b32.xlu0 %v884, 96
        %v1609 = vpop.permute.xlu0 %1608
        %v1611 = vsel %vm988, %v1559, 0
        %v1614 = vsel %vm1016, %v1609, 0
        %1616 = vmatprep.subr.bf16.mxu0 0
        %1617 = vmatpush1.bf16.msra.mxu0 %v1614
        %1618 = vmatprep.subr.bf16.mxu0 0
        %1619 = vmatpush1.bf16.msra.mxu0 0
        %1620 = vmatprep.subr.bf16.mxu0 0
        %1621 = vmatpush1.bf16.msra.mxu0 0
        %1622 = vmatprep.subr.bf16.mxu0 0
        %1623 = vmatpush1.bf16.msra.mxu0 0
        %1624 = vmatprep.subr.bf16.mxu0 0
        %1625 = vmatpush1.bf16.msra.mxu0 0
        %1626 = vmatprep.subr.bf16.mxu0 0
        %1627 = vmatpush1.bf16.msra.mxu0 0
        %1628 = vmatprep.subr.bf16.mxu0 0
        %1629 = vmatpush1.bf16.msra.mxu0 0
        %1630 = vmatprep.subr.bf16.mxu0 0
        %1631 = vmatpush1.bf16.msra.mxu0 0
        %1632 = vmatprep.subr.bf16.mxu0 0
        %1633 = vmatpush1.bf16.msra.mxu0 0
        %1634 = vmatprep.subr.bf16.mxu0 0
        %1635 = vmatpush1.bf16.msra.mxu0 0
        %1636 = vmatprep.subr.bf16.mxu0 0
        %1637 = vmatpush1.bf16.msra.mxu0 0
        %1638 = vmatprep.subr.bf16.mxu0 0
        %1639 = vmatpush1.bf16.msra.mxu0 0
        %1640 = vmatprep.subr.bf16.mxu0 0
        %1641 = vmatpush1.bf16.msra.mxu0 0
        %1642 = vmatprep.subr.bf16.mxu0 0
        %1643 = vmatpush1.bf16.msra.mxu0 0
        %1644 = vmatprep.subr.bf16.mxu0 0
        %1645 = vmatpush1.bf16.msra.mxu0 0
        %1646 = vmatprep.subr.bf16.mxu0 0
        %1647 = vmatpush1.bf16.msra.mxu0 0
        %1648 = vmatprep.mubr.bf16.mxu0 0
        %1649 = vmatmul.mubr.bf16.gmra.mrb[0].mxu0 %v1611
        %v1650 = vpop.f32.mrb[0].mxu0
        %v1651 = vadd.f32 0.0, %v1650
        %v1652 = vpop.f32.mrb[0].mxu0
        %v1653 = vpop.f32.mrb[0].mxu0
        %v1654 = vpop.f32.mrb[0].mxu0
        %1655 = vdwg.mxu0
        %v1656 = vpack.c.bf16 %v1651, %v1603
        %v1659 = vunpack.c.l.b16 %v875
        %v1660 = vunpack.c.l.b16 %v876
        %v1661 = vpack.c.b16 %v1660, %v1659
        %v1664 = vsel %vm888, %v1656, 0
        %1666 = vmatprep.subr.bf16.mxu0 0
        %1667 = vmatpush1.bf16.msra.mxu0 %v1661
        %1668 = vmatprep.subr.bf16.mxu0 0
        %1669 = vmatpush1.bf16.msra.mxu0 0
        %1670 = vmatprep.subr.bf16.mxu0 0
        %1671 = vmatpush1.bf16.msra.mxu0 0
        %1672 = vmatprep.subr.bf16.mxu0 0
        %1673 = vmatpush1.bf16.msra.mxu0 0
        %1674 = vmatprep.subr.bf16.mxu0 0
        %1675 = vmatpush1.bf16.msra.mxu0 0
        %1676 = vmatprep.subr.bf16.mxu0 0
        %1677 = vmatpush1.bf16.msra.mxu0 0
        %1678 = vmatprep.subr.bf16.mxu0 0
        %1679 = vmatpush1.bf16.msra.mxu0 0
        %1680 = vmatprep.subr.bf16.mxu0 0
        %1681 = vmatpush1.bf16.msra.mxu0 0
        %1682 = vmatprep.subr.bf16.mxu0 0
        %1683 = vmatpush1.bf16.msra.mxu0 0
        %1684 = vmatprep.subr.bf16.mxu0 0
        %1685 = vmatpush1.bf16.msra.mxu0 0
        %1686 = vmatprep.subr.bf16.mxu0 0
        %1687 = vmatpush1.bf16.msra.mxu0 0
        %1688 = vmatprep.subr.bf16.mxu0 0
        %1689 = vmatpush1.bf16.msra.mxu0 0
        %1690 = vmatprep.subr.bf16.mxu0 0
        %1691 = vmatpush1.bf16.msra.mxu0 0
        %1692 = vmatprep.subr.bf16.mxu0 0
        %1693 = vmatpush1.bf16.msra.mxu0 0
        %1694 = vmatprep.subr.bf16.mxu0 0
        %1695 = vmatpush1.bf16.msra.mxu0 0
        %1696 = vmatprep.subr.bf16.mxu0 0
        %1697 = vmatpush1.bf16.msra.mxu0 0
        %1698 = vmatprep.mubr.bf16.mxu0 0
        %1699 = vmatmul.mubr.bf16.gmra.mrb[0].mxu0 %v1664
        %v1700 = vpop.f32.mrb[0].mxu0
        %v1701 = vadd.f32 0.0, %v1700
        %v1702 = vpop.f32.mrb[0].mxu0
        %v1703 = vpop.f32.mrb[0].mxu0
        %v1704 = vadd.f32 0.0, %v1703
        %v1705 = vpop.f32.mrb[0].mxu0
        %1706 = vdwg.mxu0
        %v1707 = vadd.f32 %v1428, %v1701
        %v1708 = vadd.f32 %v1431, %v1704
        %1709 = vrot.lane.b32.xlu0 %v879, 80
        %v1710 = vpop.permute.xlu0 %1709
        %1711 = vrot.lane.b32.xlu0 %v881, 16
        %v1712 = vpop.permute.xlu0 %1711
        %v1714 = vsel %vm888, %v1710, 0
        %v1717 = vsel %vm888, %v1712, 0
        %1719 = vmatprep.subr.bf16.mxu0 0
        %1720 = vmatpush1.bf16.xpose.msra.mxu0 %v1717
        %1721 = vmatprep.subr.bf16.mxu0 0
        %1722 = vmatpush1.bf16.xpose.msra.mxu0 0
        %1723 = vmatprep.subr.bf16.mxu0 0
        %1724 = vmatpush1.bf16.xpose.msra.mxu0 0
        %1725 = vmatprep.subr.bf16.mxu0 0
        %1726 = vmatpush1.bf16.xpose.msra.mxu0 0
        %1727 = vmatprep.subr.bf16.mxu0 0
        %1728 = vmatpush1.bf16.xpose.msra.mxu0 0
        %1729 = vmatprep.subr.bf16.mxu0 0
        %1730 = vmatpush1.bf16.xpose.msra.mxu0 0
        %1731 = vmatprep.subr.bf16.mxu0 0
        %1732 = vmatpush1.bf16.xpose.msra.mxu0 0
        %1733 = vmatprep.subr.bf16.mxu0 0
        %1734 = vmatpush1.bf16.xpose.msra.mxu0 0
        %1735 = vmatprep.subr.bf16.mxu0 0
        %1736 = vmatpush1.bf16.xpose.msra.mxu0 0
        %1737 = vmatprep.subr.bf16.mxu0 0
        %1738 = vmatpush1.bf16.xpose.msra.mxu0 0
        %1739 = vmatprep.subr.bf16.mxu0 0
        %1740 = vmatpush1.bf16.xpose.msra.mxu0 0
        %1741 = vmatprep.subr.bf16.mxu0 0
        %1742 = vmatpush1.bf16.xpose.msra.mxu0 0
        %1743 = vmatprep.subr.bf16.mxu0 0
        %1744 = vmatpush1.bf16.xpose.msra.mxu0 0
        %1745 = vmatprep.subr.bf16.mxu0 0
        %1746 = vmatpush1.bf16.xpose.msra.mxu0 0
        %1747 = vmatprep.subr.bf16.mxu0 0
        %1748 = vmatpush1.bf16.xpose.msra.mxu0 0
        %1749 = vmatprep.subr.bf16.mxu0 0
        %1750 = vmatpush1.bf16.xpose.msra.mxu0 0
        %1751 = vmatprep.mubr.bf16.mxu0 0
        %1752 = vmatmul.mubr.bf16.gmra.mrb[0].mxu0 %v1714
        %v1753 = vpop.f32.mrb[0].mxu0
        %v1754 = vadd.f32 0.0, %v1753
        %v1755 = vpop.f32.mrb[0].mxu0
        %v1756 = vpop.f32.mrb[0].mxu0
        %v1757 = vpop.f32.mrb[0].mxu0
        %1758 = vdwg.mxu0
        %1759 = vrot.lane.b32.xlu0 %v880, 80
        %v1760 = vpop.permute.xlu0 %1759
        %1761 = vrot.lane.b32.xlu0 %v882, 16
        %v1762 = vpop.permute.xlu0 %1761
        %v1764 = vsel %vm888, %v1760, 0
        %v1767 = vsel %vm888, %v1762, 0
        %1769 = vmatprep.subr.bf16.mxu0 0
        %1770 = vmatpush1.bf16.xpose.msra.mxu0 %v1767
        %1771 = vmatprep.subr.bf16.mxu0 0
        %1772 = vmatpush1.bf16.xpose.msra.mxu0 0
        %1773 = vmatprep.subr.bf16.mxu0 0
        %1774 = vmatpush1.bf16.xpose.msra.mxu0 0
        %1775 = vmatprep.subr.bf16.mxu0 0
        %1776 = vmatpush1.bf16.xpose.msra.mxu0 0
        %1777 = vmatprep.subr.bf16.mxu0 0
        %1778 = vmatpush1.bf16.xpose.msra.mxu0 0
        %1779 = vmatprep.subr.bf16.mxu0 0
        %1780 = vmatpush1.bf16.xpose.msra.mxu0 0
        %1781 = vmatprep.subr.bf16.mxu0 0
        %1782 = vmatpush1.bf16.xpose.msra.mxu0 0
        %1783 = vmatprep.subr.bf16.mxu0 0
        %1784 = vmatpush1.bf16.xpose.msra.mxu0 0
        %1785 = vmatprep.subr.bf16.mxu0 0
        %1786 = vmatpush1.bf16.xpose.msra.mxu0 0
        %1787 = vmatprep.subr.bf16.mxu0 0
        %1788 = vmatpush1.bf16.xpose.msra.mxu0 0
        %1789 = vmatprep.subr.bf16.mxu0 0
        %1790 = vmatpush1.bf16.xpose.msra.mxu0 0
        %1791 = vmatprep.subr.bf16.mxu0 0
        %1792 = vmatpush1.bf16.xpose.msra.mxu0 0
        %1793 = vmatprep.subr.bf16.mxu0 0
        %1794 = vmatpush1.bf16.xpose.msra.mxu0 0
        %1795 = vmatprep.subr.bf16.mxu0 0
        %1796 = vmatpush1.bf16.xpose.msra.mxu0 0
        %1797 = vmatprep.subr.bf16.mxu0 0
        %1798 = vmatpush1.bf16.xpose.msra.mxu0 0
        %1799 = vmatprep.subr.bf16.mxu0 0
        %1800 = vmatpush1.bf16.xpose.msra.mxu0 0
        %1801 = vmatprep.mubr.bf16.mxu0 0
        %1802 = vmatmul.mubr.bf16.gmra.mrb[0].mxu0 %v1764
        %v1803 = vpop.f32.mrb[0].mxu0
        %v1804 = vadd.f32 0.0, %v1803
        %v1805 = vpop.f32.mrb[0].mxu0
        %v1806 = vpop.f32.mrb[0].mxu0
        %v1807 = vpop.f32.mrb[0].mxu0
        %1808 = vdwg.mxu0
        %v1809 = vsel %vm985, -inf, %v1754
        %v1810 = vsel %vm985, -inf, %v1804
        %v1811 = vsel %vm988, %v1809, -inf
        %1812 = vmax.xlane.f32.xlu0 %v1811
        %v1813 = vpop.xlane.xlu0 %1812
        %v1814 = vsel %vm988, %v1810, -inf
        %1815 = vmax.xlane.f32.xlu0 %v1814
        %v1816 = vpop.xlane.xlu0 %1815
        %v1817 = vsub.f32 %v1809, %v1813
        %v1818 = vsub.f32 %v1810, %v1816
        %v1819 = vmul.f32 %v1817, 1.442695
        %v1820 = vpow.pop %v1819
        %v1821 = vmul.f32 %v1818, 1.442695
        %v1822 = vpow.pop %v1821
        %v1823 = vsel %vm988, %v1820, 0.0
        %1824 = vadd.xlane.f32.xlu0 %v1823
        %v1825 = vpop.xlane.xlu0 %1824
        %v1826 = vsel %vm988, %v1822, 0.0
        %1827 = vadd.xlane.f32.xlu0 %v1826
        %v1828 = vpop.xlane.xlu0 %1827
        %v1829 = vrcp.pop %v1825
        %v1830 = vmul.f32 %v1820, %v1829
        %v1831 = vrcp.pop %v1828
        %v1832 = vmul.f32 %v1822, %v1831
        %v1833 = vpack.c.bf16 %v1830, %v1830
        %v1834 = vpack.c.bf16 %v1832, %v1832
        %1835 = vrot.lane.b32.xlu0 %v883, 80
        %v1836 = vpop.permute.xlu0 %1835
        %v1838 = vsel %vm988, %v1833, 0
        %v1841 = vsel %vm1016, %v1836, 0
        %1843 = vmatprep.subr.bf16.mxu0 0
        %1844 = vmatpush1.bf16.msra.mxu0 %v1841
        %1845 = vmatprep.subr.bf16.mxu0 0
        %1846 = vmatpush1.bf16.msra.mxu0 0
        %1847 = vmatprep.subr.bf16.mxu0 0
        %1848 = vmatpush1.bf16.msra.mxu0 0
        %1849 = vmatprep.subr.bf16.mxu0 0
        %1850 = vmatpush1.bf16.msra.mxu0 0
        %1851 = vmatprep.subr.bf16.mxu0 0
        %1852 = vmatpush1.bf16.msra.mxu0 0
        %1853 = vmatprep.subr.bf16.mxu0 0
        %1854 = vmatpush1.bf16.msra.mxu0 0
        %1855 = vmatprep.subr.bf16.mxu0 0
        %1856 = vmatpush1.bf16.msra.mxu0 0
        %1857 = vmatprep.subr.bf16.mxu0 0
        %1858 = vmatpush1.bf16.msra.mxu0 0
        %1859 = vmatprep.subr.bf16.mxu0 0
        %1860 = vmatpush1.bf16.msra.mxu0 0
        %1861 = vmatprep.subr.bf16.mxu0 0
        %1862 = vmatpush1.bf16.msra.mxu0 0
        %1863 = vmatprep.subr.bf16.mxu0 0
        %1864 = vmatpush1.bf16.msra.mxu0 0
        %1865 = vmatprep.subr.bf16.mxu0 0
        %1866 = vmatpush1.bf16.msra.mxu0 0
        %1867 = vmatprep.subr.bf16.mxu0 0
        %1868 = vmatpush1.bf16.msra.mxu0 0
        %1869 = vmatprep.subr.bf16.mxu0 0
        %1870 = vmatpush1.bf16.msra.mxu0 0
        %1871 = vmatprep.subr.bf16.mxu0 0
        %1872 = vmatpush1.bf16.msra.mxu0 0
        %1873 = vmatprep.subr.bf16.mxu0 0
        %1874 = vmatpush1.bf16.msra.mxu0 0
        %1875 = vmatprep.mubr.bf16.mxu0 0
        %1876 = vmatmul.mubr.bf16.gmra.mrb[0].mxu0 %v1838
        %v1877 = vpop.f32.mrb[0].mxu0
        %v1878 = vadd.f32 0.0, %v1877
        %v1879 = vpop.f32.mrb[0].mxu0
        %v1880 = vpop.f32.mrb[0].mxu0
        %v1881 = vpop.f32.mrb[0].mxu0
        %1882 = vdwg.mxu0
        %1883 = vrot.lane.b32.xlu0 %v884, 80
        %v1884 = vpop.permute.xlu0 %1883
        %v1886 = vsel %vm988, %v1834, 0
        %v1889 = vsel %vm1016, %v1884, 0
        %1891 = vmatprep.subr.bf16.mxu0 0
        %1892 = vmatpush1.bf16.msra.mxu0 %v1889
        %1893 = vmatprep.subr.bf16.mxu0 0
        %1894 = vmatpush1.bf16.msra.mxu0 0
        %1895 = vmatprep.subr.bf16.mxu0 0
        %1896 = vmatpush1.bf16.msra.mxu0 0
        %1897 = vmatprep.subr.bf16.mxu0 0
        %1898 = vmatpush1.bf16.msra.mxu0 0
        %1899 = vmatprep.subr.bf16.mxu0 0
        %1900 = vmatpush1.bf16.msra.mxu0 0
        %1901 = vmatprep.subr.bf16.mxu0 0
        %1902 = vmatpush1.bf16.msra.mxu0 0
        %1903 = vmatprep.subr.bf16.mxu0 0
        %1904 = vmatpush1.bf16.msra.mxu0 0
        %1905 = vmatprep.subr.bf16.mxu0 0
        %1906 = vmatpush1.bf16.msra.mxu0 0
        %1907 = vmatprep.subr.bf16.mxu0 0
        %1908 = vmatpush1.bf16.msra.mxu0 0
        %1909 = vmatprep.subr.bf16.mxu0 0
        %1910 = vmatpush1.bf16.msra.mxu0 0
        %1911 = vmatprep.subr.bf16.mxu0 0
        %1912 = vmatpush1.bf16.msra.mxu0 0
        %1913 = vmatprep.subr.bf16.mxu0 0
        %1914 = vmatpush1.bf16.msra.mxu0 0
        %1915 = vmatprep.subr.bf16.mxu0 0
        %1916 = vmatpush1.bf16.msra.mxu0 0
        %1917 = vmatprep.subr.bf16.mxu0 0
        %1918 = vmatpush1.bf16.msra.mxu0 0
        %1919 = vmatprep.subr.bf16.mxu0 0
        %1920 = vmatpush1.bf16.msra.mxu0 0
        %1921 = vmatprep.subr.bf16.mxu0 0
        %1922 = vmatpush1.bf16.msra.mxu0 0
        %1923 = vmatprep.mubr.bf16.mxu0 0
        %1924 = vmatmul.mubr.bf16.gmra.mrb[0].mxu0 %v1886
        %v1925 = vpop.f32.mrb[0].mxu0
        %v1926 = vadd.f32 0.0, %v1925
        %v1927 = vpop.f32.mrb[0].mxu0
        %v1928 = vpop.f32.mrb[0].mxu0
        %v1929 = vpop.f32.mrb[0].mxu0
        %1930 = vdwg.mxu0
        %v1931 = vpack.c.bf16 %v1926, %v1878
        %v1934 = vunpack.c.l.b16 %v877
        %v1935 = vunpack.c.l.b16 %v878
        %v1936 = vpack.c.b16 %v1935, %v1934
        %v1939 = vsel %vm888, %v1931, 0
        %1941 = vmatprep.subr.bf16.mxu0 0
        %1942 = vmatpush1.bf16.msra.mxu0 %v1936
        %1943 = vmatprep.subr.bf16.mxu0 0
        %1944 = vmatpush1.bf16.msra.mxu0 0
        %1945 = vmatprep.subr.bf16.mxu0 0
        %1946 = vmatpush1.bf16.msra.mxu0 0
        %1947 = vmatprep.subr.bf16.mxu0 0
        %1948 = vmatpush1.bf16.msra.mxu0 0
        %1949 = vmatprep.subr.bf16.mxu0 0
        %1950 = vmatpush1.bf16.msra.mxu0 0
        %1951 = vmatprep.subr.bf16.mxu0 0
        %1952 = vmatpush1.bf16.msra.mxu0 0
        %1953 = vmatprep.subr.bf16.mxu0 0
        %1954 = vmatpush1.bf16.msra.mxu0 0
        %1955 = vmatprep.subr.bf16.mxu0 0
        %1956 = vmatpush1.bf16.msra.mxu0 0
        %1957 = vmatprep.subr.bf16.mxu0 0
        %1958 = vmatpush1.bf16.msra.mxu0 0
        %1959 = vmatprep.subr.bf16.mxu0 0
        %1960 = vmatpush1.bf16.msra.mxu0 0
        %1961 = vmatprep.subr.bf16.mxu0 0
        %1962 = vmatpush1.bf16.msra.mxu0 0
        %1963 = vmatprep.subr.bf16.mxu0 0
        %1964 = vmatpush1.bf16.msra.mxu0 0
        %1965 = vmatprep.subr.bf16.mxu0 0
        %1966 = vmatpush1.bf16.msra.mxu0 0
        %1967 = vmatprep.subr.bf16.mxu0 0
        %1968 = vmatpush1.bf16.msra.mxu0 0
        %1969 = vmatprep.subr.bf16.mxu0 0
        %1970 = vmatpush1.bf16.msra.mxu0 0
        %1971 = vmatprep.subr.bf16.mxu0 0
        %1972 = vmatpush1.bf16.msra.mxu0 0
        %1973 = vmatprep.mubr.bf16.mxu0 0
        %1974 = vmatmul.mubr.bf16.gmra.mrb[0].mxu0 %v1939
        %v1975 = vpop.f32.mrb[0].mxu0
        %v1976 = vadd.f32 0.0, %v1975
        %v1977 = vpop.f32.mrb[0].mxu0
        %v1978 = vpop.f32.mrb[0].mxu0
        %v1979 = vadd.f32 0.0, %v1978
        %v1980 = vpop.f32.mrb[0].mxu0
        %1981 = vdwg.mxu0
        %v1982 = vadd.f32 %v1707, %v1976
        %v1983 = vadd.f32 %v1708, %v1979
        %v1984 = vld [vmem:[%s674] sm:$0x1]
        %v1986 = vlaneseq
        %v1987 = vshrl.u32 %v1986, 7
        %v1988 = vsub.s32 0, %v1987
        %v1989 = vrot.slane %v1984, %v1988
        %v1991 = vadd.f32 %v1982, %v1989
        %v1992 = vadd.f32 %v1983, %v1989
        %v1993 = vadd.f32 %v709, %v1991
        %v1994 = vadd.f32 %v710, %v1992
        %v1995 = vld [vmem:[%s677] sm:$0x1]
        %v1996 = vld [vmem:[%s680] sm:$0x1]
        %v1997 = vsel %vm713, %v1993, 0.0
        %1998 = vadd.xlane.f32.xlu0 %v1997
        %v1999 = vpop.xlane.xlu0 %1998
        %v2000 = vsel %vm713, %v1994, 0.0
        %2001 = vadd.xlane.f32.xlu0 %v2000
        %v2002 = vpop.xlane.xlu0 %2001
        %v2003 = vmul.f32 %v1999, %v720
        %v2004 = vmul.f32 %v2002, %v720
        %v2005 = vsub.f32 %v1993, %v2003
        %v2006 = vsub.f32 %v1994, %v2004
        %v2007 = vmul.f32 %v2005, %v2005
        %v2008 = vmul.f32 %v2006, %v2006
        %v2009 = vsel %vm713, %v2007, 0.0
        %2010 = vadd.xlane.f32.xlu0 %v2009
        %v2011 = vpop.xlane.xlu0 %2010
        %v2012 = vsel %vm713, %v2008, 0.0
        %2013 = vadd.xlane.f32.xlu0 %v2012
        %v2014 = vpop.xlane.xlu0 %2013
        %v2015 = vmul.f32 %v2011, %v720
        %v2016 = vmul.f32 %v2014, %v720
        %v2017 = vadd.f32 %v2015, 1e-05
        %v2018 = vadd.f32 %v2016, 1e-05
        %v2019 = vrsqrt.pop %v2017
        %v2020 = vrsqrt.pop %v2018
        %v2021 = vmul.f32 %v2005, %v2019
        %v2022 = vmul.f32 %v2006, %v2020
        %v2024 = vlaneseq
        %v2025 = vshrl.u32 %v2024, 7
        %v2026 = vsub.s32 0, %v2025
        %v2027 = vrot.slane %v1995, %v2026
        %v2029 = vmul.f32 %v2021, %v2027
        %v2030 = vmul.f32 %v2022, %v2027
        %v2032 = vlaneseq
        %v2033 = vshrl.u32 %v2032, 7
        %v2034 = vsub.s32 0, %v2033
        %v2035 = vrot.slane %v1996, %v2034
        %v2037 = vadd.f32 %v2029, %v2035
        %v2038 = vadd.f32 %v2030, %v2035
        %v2039 = vpack.c.bf16 %v2038, %v2037
        %v2040 = vld [vmem:[%s685] sm:$0xff]
        %v2041 = vld [vmem:[%s685 + $0x8] sm:$0xff]
        %v2042 = vld [vmem:[%s685 + $0x10] sm:$0xff]
        %v2043 = vld [vmem:[%s685 + $0x18] sm:$0xff]
        %v2044 = vld [vmem:[%s685 + $0x20] sm:$0xff]
        %v2045 = vld [vmem:[%s685 + $0x28] sm:$0xff]
        %v2046 = vld [vmem:[%s685 + $0x30] sm:$0xff]
        %v2047 = vld [vmem:[%s685 + $0x38] sm:$0xff]
        %v2048 = vld [vmem:[%s689] sm:$0x3]
        %v2050 = vlaneseq
        %v2051 = vshrl.u32 %v2050, 7
        %v2052 = vsub.s32 0, %v2051
        %v2053 = vrot.slane %v2048, %v2052
        %v2054 = vlaneseq
        %v2055 = vshrl.u32 %v2054, 7
        %v2056 = vsub.s32 1, %v2055
        %v2057 = vrot.slane %v2048, %v2056
        %v2068 = vunpack.c.l.b16 %v2040
        %v2069 = vunpack.c.h.b16 %v2040
        %v2070 = vunpack.c.l.b16 %v2041
        %v2071 = vunpack.c.h.b16 %v2041
        %v2072 = vunpack.c.l.b16 %v2042
        %v2073 = vunpack.c.h.b16 %v2042
        %v2074 = vunpack.c.l.b16 %v2043
        %v2075 = vunpack.c.h.b16 %v2043
        %v2076 = vunpack.c.l.b16 %v2044
        %v2077 = vunpack.c.h.b16 %v2044
        %v2078 = vunpack.c.l.b16 %v2045
        %v2079 = vunpack.c.h.b16 %v2045
        %v2080 = vunpack.c.l.b16 %v2046
        %v2081 = vunpack.c.h.b16 %v2046
        %v2082 = vunpack.c.l.b16 %v2047
        %v2083 = vunpack.c.h.b16 %v2047
        %v2084 = vpack.c.b16 %v2070, %v2068
        %v2085 = vpack.c.b16 %v2071, %v2069
        %v2086 = vpack.c.b16 %v2074, %v2072
        %v2087 = vpack.c.b16 %v2075, %v2073
        %v2088 = vpack.c.b16 %v2078, %v2076
        %v2089 = vpack.c.b16 %v2079, %v2077
        %v2090 = vpack.c.b16 %v2082, %v2080
        %v2091 = vpack.c.b16 %v2083, %v2081
        %v2101 = vsel %vm713, %v2039, 0
        %2103 = vmatprep.subr.bf16.mxu0 %v2085
        %2104 = vmatpush1.bf16.msra.mxu0 %v2084
        %2105 = vmatprep.subr.bf16.mxu0 %v2087
        %2106 = vmatpush1.bf16.msra.mxu0 %v2086
        %2107 = vmatprep.subr.bf16.mxu0 %v2089
        %2108 = vmatpush1.bf16.msra.mxu0 %v2088
        %2109 = vmatprep.subr.bf16.mxu0 %v2091
        %2110 = vmatpush1.bf16.msra.mxu0 %v2090
        %2111 = vmatprep.subr.bf16.mxu0 0
        %2112 = vmatpush1.bf16.msra.mxu0 0
        %2113 = vmatprep.subr.bf16.mxu0 0
        %2114 = vmatpush1.bf16.msra.mxu0 0
        %2115 = vmatprep.subr.bf16.mxu0 0
        %2116 = vmatpush1.bf16.msra.mxu0 0
        %2117 = vmatprep.subr.bf16.mxu0 0
        %2118 = vmatpush1.bf16.msra.mxu0 0
        %2119 = vmatprep.subr.bf16.mxu0 0
        %2120 = vmatpush1.bf16.msra.mxu0 0
        %2121 = vmatprep.subr.bf16.mxu0 0
        %2122 = vmatpush1.bf16.msra.mxu0 0
        %2123 = vmatprep.subr.bf16.mxu0 0
        %2124 = vmatpush1.bf16.msra.mxu0 0
        %2125 = vmatprep.subr.bf16.mxu0 0
        %2126 = vmatpush1.bf16.msra.mxu0 0
        %2127 = vmatprep.subr.bf16.mxu0 0
        %2128 = vmatpush1.bf16.msra.mxu0 0
        %2129 = vmatprep.subr.bf16.mxu0 0
        %2130 = vmatpush1.bf16.msra.mxu0 0
        %2131 = vmatprep.subr.bf16.mxu0 0
        %2132 = vmatpush1.bf16.msra.mxu0 0
        %2133 = vmatprep.subr.bf16.mxu0 0
        %2134 = vmatpush1.bf16.msra.mxu0 0
        %2135 = vmatprep.mubr.bf16.mxu0 0
        %2136 = vmatmul.mubr.bf16.gmra.mrb[0].mxu0 %v2101
        %v2137 = vpop.f32.mrb[0].mxu0
        %v2138 = vadd.f32 %v2053, %v2137
        %v2139 = vpop.f32.mrb[0].mxu0
        %v2140 = vadd.f32 %v2057, %v2139
        %v2141 = vpop.f32.mrb[0].mxu0
        %v2142 = vadd.f32 %v2053, %v2141
        %v2143 = vpop.f32.mrb[0].mxu0
        %v2144 = vadd.f32 %v2057, %v2143
        %2145 = vdwg.mxu0
        %v2146 = vmul.f32 %v2138, 1.702
        %v2147 = vmul.f32 %v2140, 1.702
        %v2148 = vmul.f32 %v2142, 1.702
        %v2149 = vmul.f32 %v2144, 1.702
        %v2150 = vxor.u32 %v2146, 2147483648
        %v2151 = vxor.u32 %v2147, 2147483648
        %v2152 = vxor.u32 %v2148, 2147483648
        %v2153 = vxor.u32 %v2149, 2147483648
        %v2154 = vmul.f32 %v2150, 1.442695
        %v2155 = vpow.pop %v2154
        %v2156 = vmul.f32 %v2151, 1.442695
        %v2157 = vpow.pop %v2156
        %v2158 = vmul.f32 %v2152, 1.442695
        %v2159 = vpow.pop %v2158
        %v2160 = vmul.f32 %v2153, 1.442695
        %v2161 = vpow.pop %v2160
        %v2162 = vadd.f32 %v2155, 1.0
        %v2163 = vadd.f32 %v2157, 1.0
        %v2164 = vadd.f32 %v2159, 1.0
        %v2165 = vadd.f32 %v2161, 1.0
        %v2166 = vrcp.pop %v2162
        %v2167 = vmul.f32 1.0, %v2166
        %v2168 = vrcp.pop %v2163
        %v2169 = vmul.f32 1.0, %v2168
        %v2170 = vrcp.pop %v2164
        %v2171 = vmul.f32 1.0, %v2170
        %v2172 = vrcp.pop %v2165
        %v2173 = vmul.f32 1.0, %v2172
        %v2174 = vmul.f32 %v2138, %v2167
        %v2175 = vmul.f32 %v2140, %v2169
        %v2176 = vmul.f32 %v2142, %v2171
        %v2177 = vmul.f32 %v2144, %v2173
        %v2178 = vpack.c.bf16 %v2176, %v2174
        %v2179 = vpack.c.bf16 %v2177, %v2175
        %v2180 = vld [vmem:[%s694] sm:$0xf]
        %v2181 = vld [vmem:[%s694 + $0x4] sm:$0xf]
        %v2182 = vld [vmem:[%s694 + $0x8] sm:$0xf]
        %v2183 = vld [vmem:[%s694 + $0xc] sm:$0xf]
        %v2184 = vld [vmem:[%s694 + $0x10] sm:$0xf]
        %v2185 = vld [vmem:[%s694 + $0x14] sm:$0xf]
        %v2186 = vld [vmem:[%s694 + $0x18] sm:$0xf]
        %v2187 = vld [vmem:[%s694 + $0x1c] sm:$0xf]
        %v2188 = vld [vmem:[%s694 + $0x20] sm:$0xf]
        %v2189 = vld [vmem:[%s694 + $0x24] sm:$0xf]
        %v2190 = vld [vmem:[%s694 + $0x28] sm:$0xf]
        %v2191 = vld [vmem:[%s694 + $0x2c] sm:$0xf]
        %v2192 = vld [vmem:[%s694 + $0x30] sm:$0xf]
        %v2193 = vld [vmem:[%s694 + $0x34] sm:$0xf]
        %v2194 = vld [vmem:[%s694 + $0x38] sm:$0xf]
        %v2195 = vld [vmem:[%s694 + $0x3c] sm:$0xf]
        %v2196 = vld [vmem:[%s694 + $0x40] sm:$0xf]
        %v2197 = vld [vmem:[%s694 + $0x44] sm:$0xf]
        %v2198 = vld [vmem:[%s694 + $0x48] sm:$0xf]
        %v2199 = vld [vmem:[%s694 + $0x4c] sm:$0xf]
        %v2200 = vld [vmem:[%s694 + $0x50] sm:$0xf]
        %v2201 = vld [vmem:[%s694 + $0x54] sm:$0xf]
        %v2202 = vld [vmem:[%s694 + $0x58] sm:$0xf]
        %v2203 = vld [vmem:[%s694 + $0x5c] sm:$0xf]
        %v2204 = vld [vmem:[%s694 + $0x60] sm:$0xf]
        %v2205 = vld [vmem:[%s694 + $0x64] sm:$0xf]
        %v2206 = vld [vmem:[%s694 + $0x68] sm:$0xf]
        %v2207 = vld [vmem:[%s694 + $0x6c] sm:$0xf]
        %v2208 = vld [vmem:[%s694 + $0x70] sm:$0xf]
        %v2209 = vld [vmem:[%s694 + $0x74] sm:$0xf]
        %v2210 = vld [vmem:[%s694 + $0x78] sm:$0xf]
        %v2211 = vld [vmem:[%s694 + $0x7c] sm:$0xf]
        %v2212 = vld [vmem:[%s697] sm:$0x1]
        %v2214 = vlaneseq
        %v2215 = vshrl.u32 %v2214, 7
        %v2216 = vsub.s32 0, %v2215
        %v2217 = vrot.slane %v2212, %v2216
        %v2251 = vunpack.c.l.b16 %v2180
        %v2252 = vunpack.c.l.b16 %v2181
        %v2253 = vunpack.c.l.b16 %v2182
        %v2254 = vunpack.c.l.b16 %v2183
        %v2255 = vunpack.c.l.b16 %v2184
        %v2256 = vunpack.c.l.b16 %v2185
        %v2257 = vunpack.c.l.b16 %v2186
        %v2258 = vunpack.c.l.b16 %v2187
        %v2259 = vunpack.c.l.b16 %v2188
        %v2260 = vunpack.c.l.b16 %v2189
        %v2261 = vunpack.c.l.b16 %v2190
        %v2262 = vunpack.c.l.b16 %v2191
        %v2263 = vunpack.c.l.b16 %v2192
        %v2264 = vunpack.c.l.b16 %v2193
        %v2265 = vunpack.c.l.b16 %v2194
        %v2266 = vunpack.c.l.b16 %v2195
        %v2267 = vunpack.c.l.b16 %v2196
        %v2268 = vunpack.c.l.b16 %v2197
        %v2269 = vunpack.c.l.b16 %v2198
        %v2270 = vunpack.c.l.b16 %v2199
        %v2271 = vunpack.c.l.b16 %v2200
        %v2272 = vunpack.c.l.b16 %v2201
        %v2273 = vunpack.c.l.b16 %v2202
        %v2274 = vunpack.c.l.b16 %v2203
        %v2275 = vunpack.c.l.b16 %v2204
        %v2276 = vunpack.c.l.b16 %v2205
        %v2277 = vunpack.c.l.b16 %v2206
        %v2278 = vunpack.c.l.b16 %v2207
        %v2279 = vunpack.c.l.b16 %v2208
        %v2280 = vunpack.c.l.b16 %v2209
        %v2281 = vunpack.c.l.b16 %v2210
        %v2282 = vunpack.c.l.b16 %v2211
        %v2283 = vpack.c.b16 %v2252, %v2251
        %v2284 = vpack.c.b16 %v2254, %v2253
        %v2285 = vpack.c.b16 %v2256, %v2255
        %v2286 = vpack.c.b16 %v2258, %v2257
        %v2287 = vpack.c.b16 %v2260, %v2259
        %v2288 = vpack.c.b16 %v2262, %v2261
        %v2289 = vpack.c.b16 %v2264, %v2263
        %v2290 = vpack.c.b16 %v2266, %v2265
        %v2291 = vpack.c.b16 %v2268, %v2267
        %v2292 = vpack.c.b16 %v2270, %v2269
        %v2293 = vpack.c.b16 %v2272, %v2271
        %v2294 = vpack.c.b16 %v2274, %v2273
        %v2295 = vpack.c.b16 %v2276, %v2275
        %v2296 = vpack.c.b16 %v2278, %v2277
        %v2297 = vpack.c.b16 %v2280, %v2279
        %v2298 = vpack.c.b16 %v2282, %v2281
        %2315 = vmatprep.subr.bf16.mxu0 0
        %2316 = vmatpush1.bf16.msra.mxu0 %v2283
        %2317 = vmatprep.subr.bf16.mxu0 0
        %2318 = vmatpush1.bf16.msra.mxu0 %v2284
        %2319 = vmatprep.subr.bf16.mxu0 0
        %2320 = vmatpush1.bf16.msra.mxu0 %v2285
        %2321 = vmatprep.subr.bf16.mxu0 0
        %2322 = vmatpush1.bf16.msra.mxu0 %v2286
        %2323 = vmatprep.subr.bf16.mxu0 0
        %2324 = vmatpush1.bf16.msra.mxu0 %v2287
        %2325 = vmatprep.subr.bf16.mxu0 0
        %2326 = vmatpush1.bf16.msra.mxu0 %v2288
        %2327 = vmatprep.subr.bf16.mxu0 0
        %2328 = vmatpush1.bf16.msra.mxu0 %v2289
        %2329 = vmatprep.subr.bf16.mxu0 0
        %2330 = vmatpush1.bf16.msra.mxu0 %v2290
        %2331 = vmatprep.subr.bf16.mxu0 0
        %2332 = vmatpush1.bf16.msra.mxu0 %v2291
        %2333 = vmatprep.subr.bf16.mxu0 0
        %2334 = vmatpush1.bf16.msra.mxu0 %v2292
        %2335 = vmatprep.subr.bf16.mxu0 0
        %2336 = vmatpush1.bf16.msra.mxu0 %v2293
        %2337 = vmatprep.subr.bf16.mxu0 0
        %2338 = vmatpush1.bf16.msra.mxu0 %v2294
        %2339 = vmatprep.subr.bf16.mxu0 0
        %2340 = vmatpush1.bf16.msra.mxu0 %v2295
        %2341 = vmatprep.subr.bf16.mxu0 0
        %2342 = vmatpush1.bf16.msra.mxu0 %v2296
        %2343 = vmatprep.subr.bf16.mxu0 0
        %2344 = vmatpush1.bf16.msra.mxu0 %v2297
        %2345 = vmatprep.subr.bf16.mxu0 0
        %2346 = vmatpush1.bf16.msra.mxu0 %v2298
        %2347 = vmatprep.mubr.bf16.mxu0 %v2179
        %2348 = vmatmul.mubr.bf16.gmra.mrb[0].mxu0 %v2178
        %v2349 = vpop.f32.mrb[0].mxu0
        %v2350 = vadd.f32 %v2217, %v2349
        %v2351 = vpop.f32.mrb[0].mxu0
        %v2352 = vpop.f32.mrb[0].mxu0
        %v2353 = vadd.f32 %v2217, %v2352
        %v2354 = vpop.f32.mrb[0].mxu0
        %2355 = vdwg.mxu0
        %v2356 = vadd.f32 %v1993, %v2350
        %v2357 = vadd.f32 %v1994, %v2353
        %p2358 = scmp.lt.s32.totalorder %s32, 1
        // Predicated region
        $region85: #{tpu_custom_call.1} parent=79 // pred_check
          %p2359 = pneg %p2358
        $region86: #{tpu_custom_call.1} parent=79 // pred_check_branch
          %2361 = sbr.rel (%p2359) target = $region88
        $region87: #{tpu_custom_call.1} parent=79 // pred_region
          %2362 = vst.msk [vmem:[#allocation2] sm:$0xff] %vm713, %v2356
          %2363 = vst.msk [vmem:[#allocation2 + $0x8] sm:$0xff] %vm713, %v2357
        $region88: #{tpu_custom_call.1} parent=79 // pred_fallthru
          _
        %p2364 = scmp.eq.s32.totalorder %s32, 1
        // Predicated region
        $region89: #{tpu_custom_call.1} parent=79 // pred_check
          %p2365 = pneg %p2364
        $region90: #{tpu_custom_call.1} parent=79 // pred_check_branch
          %2367 = sbr.rel (%p2365) target = $region92
        $region91: #{tpu_custom_call.1} parent=79 // pred_region
          %v2368 = vld [vmem:[%s13] sm:$0x1]
          %v2369 = vld [vmem:[%s14] sm:$0x1]
          %v2370 = vsel %vm713, %v2356, 0.0
          %2371 = vadd.xlane.f32.xlu0 %v2370
          %v2372 = vpop.xlane.xlu0 %2371
          %v2373 = vsel %vm713, %v2357, 0.0
          %2374 = vadd.xlane.f32.xlu0 %v2373
          %v2375 = vpop.xlane.xlu0 %2374
          %v2376 = vmul.f32 %v2372, %v720
          %v2377 = vmul.f32 %v2375, %v720
          %v2378 = vsub.f32 %v2356, %v2376
          %v2379 = vsub.f32 %v2357, %v2377
          %v2380 = vmul.f32 %v2378, %v2378
          %v2381 = vmul.f32 %v2379, %v2379
          %v2382 = vsel %vm713, %v2380, 0.0
          %2383 = vadd.xlane.f32.xlu0 %v2382
          %v2384 = vpop.xlane.xlu0 %2383
          %v2385 = vsel %vm713, %v2381, 0.0
          %2386 = vadd.xlane.f32.xlu0 %v2385
          %v2387 = vpop.xlane.xlu0 %2386
          %v2388 = vmul.f32 %v2384, %v720
          %v2389 = vmul.f32 %v2387, %v720
          %v2390 = vadd.f32 %v2388, 1e-05
          %v2391 = vadd.f32 %v2389, 1e-05
          %v2392 = vrsqrt.pop %v2390
          %v2393 = vrsqrt.pop %v2391
          %v2394 = vmul.f32 %v2378, %v2392
          %v2395 = vmul.f32 %v2379, %v2393
          %v2397 = vlaneseq
          %v2398 = vshrl.u32 %v2397, 7
          %v2399 = vsub.s32 0, %v2398
          %v2400 = vrot.slane %v2368, %v2399
          %v2402 = vmul.f32 %v2394, %v2400
          %v2403 = vmul.f32 %v2395, %v2400
          %v2405 = vlaneseq
          %v2406 = vshrl.u32 %v2405, 7
          %v2407 = vsub.s32 0, %v2406
          %v2408 = vrot.slane %v2369, %v2407
          %v2410 = vadd.f32 %v2402, %v2408
          %v2411 = vadd.f32 %v2403, %v2408
          %2412 = vst.msk [vmem:[#allocation2] sm:$0xff] %vm713, %v2410
          %2413 = vst.msk [vmem:[#allocation2 + $0x8] sm:$0xff] %vm713, %v2411
        $region92: #{tpu_custom_call.1} parent=79 // pred_fallthru
          _
        // Predicated region
        $region93: #{tpu_custom_call.1} parent=79 // pred_check
          %p2414 = pneg %p437
        $region94: #{tpu_custom_call.1} parent=79 // pred_check_branch
          %2416 = sbr.rel (%p2414) target = $region96
        $region95: #{tpu_custom_call.1} parent=79 // pred_region
          %s2417 = smul.u32 2, %s31
          %s2419 = ssub.s32 256, 256
          %2420 = vsyncadd [#allocation3], %s2419
          %s2421 = smul.addr %s2417, 128
          %s2422 = scalar_lea.hbm %s15, %s2421
          %s2423 = sshll.u32 [#allocation2], 4
          %s2424 = int_to_ptr.vmem [resolvable:$true] %s2423
          %2429 = dma.vmem_to_hbm [thread:$0]  %s2424, 256, %s2422, [#allocation3], 128, 128, 8
        $region96: #{tpu_custom_call.1} parent=79 // pred_fallthru
          _
        // Predicated region
        $region97: #{tpu_custom_call.1} parent=79 // pred_check
          %p2430 = pneg %p437
        $region98: #{tpu_custom_call.1} parent=79 // pred_check_branch
          %2432 = sbr.rel (%p2430) target = $region100
        $region99: #{tpu_custom_call.1} parent=79 // pred_region
          %2433 = dma.done [#allocation3], 256
        $region100: #{tpu_custom_call.1} parent=79 // pred_fallthru
          _
      $region80: #{tpu_custom_call.1} parent=5 // pred_fallthru
        _
      %p2434 = scmp.le.s32.totalorder 2, %s22
      // Predicated region
      $region101: #{tpu_custom_call.1} parent=5 // pred_check
        %p2435 = pneg %p2434
      $region102: #{tpu_custom_call.1} parent=5 // pred_check_branch
        %2437 = sbr.rel (%p2435) target = $region104
      $region103: #{tpu_custom_call.1} parent=5 // pred_region
        %s2438 = ssub.s32 %s22, 2
      $region104: #{tpu_custom_call.1} parent=5 // pred_fallthru
        _
    $region6: #{tpu_custom_call.1} parent=1 // loop_footer
      %s26 = sadd.s32 1, %s22
    $region7: #{tpu_custom_call.1} parent=1 // loop_footer_branch
      %21 = sbr.rel target = $region3
    $region8: #{tpu_custom_call.1} parent=1 // loop_exit
      _
    %2439 = vsyncpa [#allocation3], 1
    %s2440 = scalar_lea.sflag [#allocation3], 1
    %2441 = vsyncpa %s2440, 1

</llo_original>
